<compile_context>
chip_gen: v7x
topology: tpu7x:2x2x1
jax: 0.10.0
libtpu: 0.0.40
codegen_flags: <defaults>
</compile_context>

<pallas_src>
import jax
import jax.numpy as jnp
from jax.experimental import pallas as pl
from jax.experimental.pallas import tpu as pltpu

DEC_INIT_LAMBDA = 0.5   # dec_init_lambda
ATT_TEMP = 1.0          # att_temp
NEG_BIG = -1.0e30       # bias for padded vocab columns (exp underflows to 0)


def _gru_from_gates(gi, gh, h, bh_n):
    """PyTorch nn.GRUCell update from precomputed gate projections.

    gi = x @ Wi_[r|z|n] + [bi_r+bh_r | bi_z+bh_z | bi_n]   -> (B, 3H)
    gh = h @ Wh_[r|z|n]                                    -> (B, 3H)
    bh_n is applied inside r * (.) exactly as PyTorch does.
    """
    H = h.shape[-1]
    r = jax.nn.sigmoid(gi[:, 0:H] + gh[:, 0:H])
    z = jax.nn.sigmoid(gi[:, H:2 * H] + gh[:, H:2 * H])
    n = jnp.tanh(gi[:, 2 * H:3 * H] + r * (gh[:, 2 * H:3 * H] + bh_n))
    return (1.0 - z) * n + z * h


# --------------------------------------------------------------------------
# Phase 1: recurrence kernel -> per-step hid2out features (T_dec, B, E)
# --------------------------------------------------------------------------
def recurrence_kernel(
    y_emb_ref, ctx_ref, txt_ref,
    w_init_ref,
    wi0_ref, wh0_ref, bi0_ref, bhn0_ref,
    wi1_ref, wh1_ref, bi1_ref, bhn1_ref,
    w_c2c_ref, w_h2c_ref, w_mlp_ref, w_c2h_ref,
    w_ho_ref, b_ho_ref,
    feat_ref,                 # out: (T_dec, B, E)
    gi0_ref,                  # scratch: (T_dec, B, 3H)
):
    dot = lambda a, b: jnp.dot(a, b, preferred_element_type=jnp.float32)

    T_dec, B, E = y_emb_ref.shape
    ctx = ctx_ref[...]                                        # (S, B, C)
    S, _, C = ctx.shape
    H = w_c2h_ref.shape[1]

    wh0, bhn0 = wh0_ref[...], bhn0_ref[...]
    wi1, wh1, bi1, bhn1 = wi1_ref[...], wh1_ref[...], bi1_ref[...], bhn1_ref[...]
    w_h2c, w_mlp, w_c2h = w_h2c_ref[...], w_mlp_ref[...], w_c2h_ref[...]
    w_ho, b_ho = w_ho_ref[...], b_ho_ref[...]

    # ---- f_init / init_hidden (ctx_mask is None -> plain mean over S) ----
    mean_ctx = jnp.mean(ctx, axis=0)                          # (B, C)
    mixed = DEC_INIT_LAMBDA * mean_ctx + (1.0 - DEC_INIT_LAMBDA) * txt_ref[...]
    h0 = jnp.tanh(dot(mixed, w_init_ref[...]))                # (B, H)

    # ---- loop-invariant hoists (one big MXU matmul each) ----
    ctx_tr = dot(ctx.reshape(S * B, C), w_c2c_ref[...]).reshape(S, B, C)
    gi0_ref[...] = (
        dot(y_emb_ref[...].reshape(T_dec * B, E), wi0_ref[...]) + bi0_ref[...]
    ).reshape(T_dec, B, 3 * H)

    # ---- one timestep of recurrence (f_next, minus the vocab projection) ----
    def step(t, h):
        # dec0 GRU cell: only the hidden-side dot is on the serial path now.
        h1 = _gru_from_gates(gi0_ref[t], dot(h, wh0), h, bhn0)       # (B, H)

        # MLP attention (att_bottleneck='ctx', transform_ctx=True, no bias)
        hq = dot(h1, w_h2c)                                          # (B, C)
        inner = jnp.tanh(ctx_tr + hq[None, :, :])                    # (S, B, C)
        scores = dot(inner.reshape(S * B, C), w_mlp).reshape(S, B, 1)
        if ATT_TEMP != 1.0:
            scores = scores / ATT_TEMP
        m = jnp.max(scores, axis=0, keepdims=True)
        e = jnp.exp(scores - m)
        # NOTE: pl.reciprocal(..., approx=True) would push this divide to the
        # EUP, but costs ~1e-3 relative precision; kept exact so the tight
        # correctness tolerance in __main__ holds.
        alpha = e / jnp.sum(e, axis=0, keepdims=True)                # softmax(S)
        wctx = jnp.sum(alpha * ctx, axis=0)                          # (B, C)
        z_t = dot(wctx, w_c2h)                                       # (B, H)

        # dec1 GRU cell (its input depends on h1, cannot be hoisted)
        h2 = _gru_from_gates(dot(z_t, wi1) + bi1, dot(h1, wh1), h1, bhn1)

        # hid2out (tanh, zero-init bias); vocab projection deferred to phase 2
        feat_ref[t] = jnp.tanh(dot(h2, w_ho) + b_ho)                 # (B, E)
        return h2

    jax.lax.fori_loop(0, T_dec, step, h0)


# --------------------------------------------------------------------------
# Phase 2: (rows, E) @ (E, V) + online logsumexp + NLL(sum, ignore_index=0)
# grid = (row_blocks [parallel], V_blocks [arbitrary reduction])
# --------------------------------------------------------------------------
def proj_nll_kernel(feat_ref, tgt_ref, w_ref, b_ref, nll_ref,
                    m_sc, s_sc, pick_sc):
    j = pl.program_id(1)

    @pl.when(j == 0)
    def _():
        m_sc[...] = jnp.full_like(m_sc, -jnp.inf)
        s_sc[...] = jnp.zeros_like(s_sc)
        pick_sc[...] = jnp.zeros_like(pick_sc)

    o = jnp.dot(feat_ref[...], w_ref[...],
                preferred_element_type=jnp.float32) + b_ref[...]     # (R, Vblk)
    v_blk = o.shape[1]

    # online logsumexp across V tiles
    m_prev = m_sc[...]
    m_new = jnp.maximum(m_prev, jnp.max(o, axis=-1, keepdims=True))
    s_sc[...] = (s_sc[...] * jnp.exp(m_prev - m_new)
                 + jnp.sum(jnp.exp(o - m_new), axis=-1, keepdims=True))
    m_sc[...] = m_new

    # accumulate the target-class logit (one-hot select; no log_p materialized)
    tgt = tgt_ref[...]                                               # (R, 1) i32
    col = jax.lax.broadcasted_iota(jnp.int32, o.shape, 1) + j * v_blk
    pick = (col == tgt) & (tgt != 0)
    pick_sc[...] += jnp.sum(jnp.where(pick, o, 0.0), axis=-1, keepdims=True)

    @pl.when(j == pl.num_programs(1) - 1)
    def _():
        valid = (tgt_ref[...] != 0).astype(jnp.float32)
        lse = m_sc[...] + jnp.log(s_sc[...])
        # -log_softmax[target] summed later; ignored (tgt==0) rows contribute 0
        nll_ref[...] = valid * lse - pick_sc[...]


# --------------------------------------------------------------------------
# Wrappers
# --------------------------------------------------------------------------
def _stack_gru(wi, wh, bi, bh):
    """Stack PyTorch [r,z,n] GRU params for the fused 2-dot formulation."""
    wi_s = jnp.concatenate([wi[0], wi[1], wi[2]], axis=1)                 # (in,3H)
    wh_s = jnp.concatenate([wh[0], wh[1], wh[2]], axis=1)                 # (H,3H)
    bi_full = jnp.concatenate([bi[0] + bh[0], bi[1] + bh[1], bi[2]], axis=1)
    bh_n = bh[2]                                                          # (1,H)
    return wi_s, wh_s, bi_full, bh_n


def _proj_nll_loss(feats_flat, tgt_flat, w_op, b_op, *, r_blk=8, v_blk=128):
    """Vocab projection + log_softmax + NLL(sum, ignore_index=0), V-tiled."""
    R, E = feats_flat.shape
    V = w_op.shape[1]
    nR, nV = pl.cdiv(R, r_blk), pl.cdiv(V, v_blk)
    r_pad, v_pad = nR * r_blk - R, nV * v_blk - V
    if r_pad:
        feats_flat = jnp.pad(feats_flat, ((0, r_pad), (0, 0)))
        tgt_flat = jnp.pad(tgt_flat, ((0, r_pad), (0, 0)))   # pad tgt=0 => ignored
    if v_pad:
        w_op = jnp.pad(w_op, ((0, 0), (0, v_pad)))
        b_op = jnp.pad(b_op, ((0, 0), (0, v_pad)), constant_values=NEG_BIG)

    nll_rows = pl.pallas_call(
        proj_nll_kernel,
        out_shape=jax.ShapeDtypeStruct((nR * r_blk, 1), jnp.float32),
        grid_spec=pltpu.PrefetchScalarGridSpec(
            num_scalar_prefetch=0,
            grid=(nR, nV),
            in_specs=[
                pl.BlockSpec((r_blk, E), lambda i, j: (i, 0)),       # features
                pl.BlockSpec((r_blk, 1), lambda i, j: (i, 0)),       # targets
                pl.BlockSpec((E, v_blk), lambda i, j: (0, j)),       # w_op tile
                pl.BlockSpec((1, v_blk), lambda i, j: (0, j)),       # b_op tile
            ],
            out_specs=pl.BlockSpec((r_blk, 1), lambda i, j: (i, 0)),
            scratch_shapes=[pltpu.VMEM((r_blk, 1), jnp.float32)] * 3,
        ),
        compiler_params=pltpu.CompilerParams(
            dimension_semantics=("parallel", "arbitrary"),
            vmem_limit_bytes=32 * 1024 * 1024,
        ),
    )(feats_flat, tgt_flat, w_op, b_op)
    return jnp.sum(nll_rows)


def vag_decoder_forward(params, ctx, txt_ctx, y):
    """Returns {'loss': scalar}, matching VAGConditionalDecoder.forward."""
    # Glue kept in XLA: embedding gather + target layout. All matmuls, the
    # recurrence, attention, logsumexp and the NLL run inside the kernels.
    y_emb = params["emb"][y[:-1]]                         # (T_dec, B, E)
    targets = y[1:].astype(jnp.int32)                     # (T_dec, B)
    T_dec, B, E = y_emb.shape

    wi0, wh0, bi0, bhn0 = _stack_gru(params["wi0"], params["wh0"],
                                     params["bi0"], params["bh0"])
    wi1, wh1, bi1, bhn1 = _stack_gru(params["wi1"], params["wh1"],
                                     params["bi1"], params["bh1"])
    w_mlp_col = params["w_mlp"].T                         # (C, 1)
    H = wh0.shape[0]

    # Phase 1: single-invocation recurrence (all buffers fit VMEM at these
    # sizes); the (T_dec,B,3H) dec0 input projection lives in a VMEM scratch.
    feats = pl.pallas_call(
        recurrence_kernel,
        out_shape=jax.ShapeDtypeStruct((T_dec, B, E), jnp.float32),
        scratch_shapes=[pltpu.VMEM((T_dec, B, 3 * H), jnp.float32)],
        compiler_params=pltpu.CompilerParams(vmem_limit_bytes=32 * 1024 * 1024),
    )(
        y_emb, ctx, txt_ctx,
        params["w_init"],
        wi0, wh0, bi0, bhn0,
        wi1, wh1, bi1, bhn1,
        params["w_c2c"], params["w_h2c"], w_mlp_col, params["w_c2h"],
        params["w_ho"], params["b_ho"],
    )

    # Phase 2: batched, V-tiled vocab projection + loss.
    loss = _proj_nll_loss(
        feats.reshape(T_dec * B, E),
        targets.reshape(T_dec * B, 1),
        params["w_op"], params["b_op"],
    )
    return {"loss": loss}


# --------------------------------------------------------------------------
# Pure-JAX reference (port of the PyTorch forward) for correctness checking
# --------------------------------------------------------------------------
def reference_forward(params, ctx, txt_ctx, y):
    def gru(x, h, wi, wh, bi, bh):
        r = jax.nn.sigmoid(x @ wi[0] + bi[0] + h @ wh[0] + bh[0])
        z = jax.nn.sigmoid(x @ wi[1] + bi[1] + h @ wh[1] + bh[1])
        n = jnp.tanh(x @ wi[2] + bi[2] + r * (h @ wh[2] + bh[2]))
        return (1.0 - z) * n + z * h

    mean_ctx = ctx.mean(0)
    mixed = DEC_INIT_LAMBDA * mean_ctx + (1.0 - DEC_INIT_LAMBDA) * txt_ctx
    h = jnp.tanh(mixed @ params["w_init"])
    ctx_tr = jnp.einsum("sbc,cd->sbd", ctx, params["w_c2c"])
    loss = jnp.float32(0.0)
    T = y.shape[0]
    for t in range(T - 1):
        x = params["emb"][y[t]]
        h1 = gru(x, h, params["wi0"], params["wh0"], params["bi0"], params["bh0"])
        inner = jnp.tanh(ctx_tr + (h1 @ params["w_h2c"])[None])
        scores = jnp.sum(inner * params["w_mlp"][None], axis=-1) / ATT_TEMP
        alpha = jax.nn.softmax(scores, axis=0)
        wctx = jnp.sum(alpha[:, :, None] * ctx, axis=0)
        z_t = wctx @ params["w_c2h"]
        h2 = gru(z_t, h1, params["wi1"], params["wh1"], params["bi1"], params["bh1"])
        h = h2
        logit = jnp.tanh(h2 @ params["w_ho"] + params["b_ho"])
        log_p = jax.nn.log_softmax(logit @ params["w_op"] + params["b_op"], axis=-1)
        tgt = y[t + 1]
        picked = jnp.take_along_axis(log_p, tgt[:, None], axis=-1)[:, 0]
        loss = loss + (-jnp.sum(jnp.where(tgt != 0, picked, 0.0)))
    return loss


if __name__ == "__main__":
    # Small shapes consistent with the module's forward.
    # V=192 deliberately exercises the V-padding path (v_blk=128 -> 2 V tiles).
    B, S, C, H, E, V, T = 8, 8, 32, 32, 32, 192, 8

    key = jax.random.PRNGKey(0)
    ks = jax.random.split(key, 24)

    def nrm(k, shape, scale=0.1):
        return (scale * jax.random.normal(k, shape)).astype(jnp.float32)

    emb = nrm(ks[0], (V, E), 0.5).at[0].set(0.0)           # padding_idx=0
    params = dict(
        emb=emb,
        w_init=nrm(ks[1], (C, H)),                          # ff_dec_init (bias=False)
        wi0=nrm(ks[2], (3, E, H)), wh0=nrm(ks[3], (3, H, H)),
        bi0=nrm(ks[4], (3, 1, H)), bh0=nrm(ks[5], (3, 1, H)),
        wi1=nrm(ks[6], (3, H, H)), wh1=nrm(ks[7], (3, H, H)),
        bi1=nrm(ks[8], (3, 1, H)), bh1=nrm(ks[9], (3, 1, H)),
        w_c2c=nrm(ks[10], (C, C)), w_h2c=nrm(ks[11], (H, C)),
        w_mlp=nrm(ks[12], (1, C)), w_c2h=nrm(ks[13], (C, H)),
        w_ho=nrm(ks[14], (H, E)),
        b_ho=jnp.zeros((1, E), jnp.float32),                # hid2out bias_zero=True
        w_op=nrm(ks[15], (E, V)), b_op=nrm(ks[16], (1, V)),
    )
    ctx = nrm(ks[17], (S, B, C), 1.0)        # ctx_dict[ctx_name][0], mask=None
    txt_ctx = nrm(ks[18], (B, C), 1.0)       # ctx_dict['sent'][0] squeezed
    y = jax.random.randint(ks[19], (T, B), 0, V, dtype=jnp.int32)

    out = vag_decoder_forward(params, ctx, txt_ctx, y)
    loss = jax.block_until_ready(out["loss"])

    ref = reference_forward(params, ctx, txt_ctx, y)
    assert jnp.allclose(loss, ref, rtol=1e-4, atol=1e-3), (float(loss), float(ref))
    print("KERNEL_OK")
</pallas_src>

<mosaic_0001>
module attributes {stable_mosaic.version = 11 : i64} {
  func.func @recurrence_kernel(%arg0: memref<7x8x32xf32, #tpu.memory_space<vmem>>, %arg1: memref<8x8x32xf32, #tpu.memory_space<vmem>>, %arg2: memref<8x32xf32, #tpu.memory_space<vmem>>, %arg3: memref<32x32xf32, #tpu.memory_space<vmem>>, %arg4: memref<32x96xf32, #tpu.memory_space<vmem>>, %arg5: memref<32x96xf32, #tpu.memory_space<vmem>>, %arg6: memref<1x96xf32, #tpu.memory_space<vmem>>, %arg7: memref<1x32xf32, #tpu.memory_space<vmem>>, %arg8: memref<32x96xf32, #tpu.memory_space<vmem>>, %arg9: memref<32x96xf32, #tpu.memory_space<vmem>>, %arg10: memref<1x96xf32, #tpu.memory_space<vmem>>, %arg11: memref<1x32xf32, #tpu.memory_space<vmem>>, %arg12: memref<32x32xf32, #tpu.memory_space<vmem>>, %arg13: memref<32x32xf32, #tpu.memory_space<vmem>>, %arg14: memref<32x1xf32, #tpu.memory_space<vmem>>, %arg15: memref<32x32xf32, #tpu.memory_space<vmem>>, %arg16: memref<32x32xf32, #tpu.memory_space<vmem>>, %arg17: memref<1x32xf32, #tpu.memory_space<vmem>>, %arg18: memref<7x8x32xf32, #tpu.memory_space<vmem>>, %arg19: memref<7x8x96xf32, #tpu.memory_space<vmem>>) attributes {dimension_semantics = [], scalar_prefetch = 0 : i64, scratch_operands = 1 : i64, tpu.core_type = #tpu.core_type<tc>} {
    %c0 = arith.constant 0 : index
    %c0_0 = arith.constant 0 : index
    %c0_1 = arith.constant 0 : index
    %0 = vector.load %arg1[%c0, %c0_0, %c0_1] : memref<8x8x32xf32, #tpu.memory_space<vmem>>, vector<8x8x32xf32>
    %c0_2 = arith.constant 0 : index
    %c0_3 = arith.constant 0 : index
    %1 = vector.load %arg5[%c0_2, %c0_3] : memref<32x96xf32, #tpu.memory_space<vmem>>, vector<32x96xf32>
    %c0_4 = arith.constant 0 : index
    %c0_5 = arith.constant 0 : index
    %2 = vector.load %arg7[%c0_4, %c0_5] : memref<1x32xf32, #tpu.memory_space<vmem>>, vector<1x32xf32>
    %c0_6 = arith.constant 0 : index
    %c0_7 = arith.constant 0 : index
    %3 = vector.load %arg8[%c0_6, %c0_7] : memref<32x96xf32, #tpu.memory_space<vmem>>, vector<32x96xf32>
    %c0_8 = arith.constant 0 : index
    %c0_9 = arith.constant 0 : index
    %4 = vector.load %arg9[%c0_8, %c0_9] : memref<32x96xf32, #tpu.memory_space<vmem>>, vector<32x96xf32>
    %c0_10 = arith.constant 0 : index
    %c0_11 = arith.constant 0 : index
    %5 = vector.load %arg10[%c0_10, %c0_11] : memref<1x96xf32, #tpu.memory_space<vmem>>, vector<1x96xf32>
    %c0_12 = arith.constant 0 : index
    %c0_13 = arith.constant 0 : index
    %6 = vector.load %arg11[%c0_12, %c0_13] : memref<1x32xf32, #tpu.memory_space<vmem>>, vector<1x32xf32>
    %c0_14 = arith.constant 0 : index
    %c0_15 = arith.constant 0 : index
    %7 = vector.load %arg13[%c0_14, %c0_15] : memref<32x32xf32, #tpu.memory_space<vmem>>, vector<32x32xf32>
    %c0_16 = arith.constant 0 : index
    %c0_17 = arith.constant 0 : index
    %8 = vector.load %arg14[%c0_16, %c0_17] : memref<32x1xf32, #tpu.memory_space<vmem>>, vector<32x1xf32>
    %c0_18 = arith.constant 0 : index
    %c0_19 = arith.constant 0 : index
    %9 = vector.load %arg15[%c0_18, %c0_19] : memref<32x32xf32, #tpu.memory_space<vmem>>, vector<32x32xf32>
    %c0_20 = arith.constant 0 : index
    %c0_21 = arith.constant 0 : index
    %10 = vector.load %arg16[%c0_20, %c0_21] : memref<32x32xf32, #tpu.memory_space<vmem>>, vector<32x32xf32>
    %c0_22 = arith.constant 0 : index
    %c0_23 = arith.constant 0 : index
    %11 = vector.load %arg17[%c0_22, %c0_23] : memref<1x32xf32, #tpu.memory_space<vmem>>, vector<1x32xf32>
    %cst = arith.constant dense<0.000000e+00> : vector<8x32xf32>
    %12 = vector.multi_reduction <add>, %0, %cst [0] : vector<8x8x32xf32> to vector<8x32xf32>
    %cst_24 = arith.constant 8.000000e+00 : f32
    %13 = vector.broadcast %cst_24 : f32 to vector<8x32xf32>
    %14 = arith.divf %12, %13 : vector<8x32xf32>
    %cst_25 = arith.constant 5.000000e-01 : f32
    %15 = vector.broadcast %cst_25 : f32 to vector<8x32xf32>
    %16 = arith.mulf %15, %14 : vector<8x32xf32>
    %c0_26 = arith.constant 0 : index
    %c0_27 = arith.constant 0 : index
    %17 = vector.load %arg2[%c0_26, %c0_27] : memref<8x32xf32, #tpu.memory_space<vmem>>, vector<8x32xf32>
    %cst_28 = arith.constant 5.000000e-01 : f32
    %18 = vector.broadcast %cst_28 : f32 to vector<8x32xf32>
    %19 = arith.mulf %18, %17 : vector<8x32xf32>
    %20 = arith.addf %16, %19 : vector<8x32xf32>
    %c0_29 = arith.constant 0 : index
    %c0_30 = arith.constant 0 : index
    %21 = vector.load %arg3[%c0_29, %c0_30] : memref<32x32xf32, #tpu.memory_space<vmem>>, vector<32x32xf32>
    %cst_31 = arith.constant dense<0.000000e+00> : vector<8x32xf32>
    %22 = tpu.matmul %20, %21, %cst_31 {dimension_numbers = #tpu.dot_dimension_numbers<[1], [0], [0], [1], [0, 0, 1, 1], [], []>} : vector<8x32xf32>, vector<32x32xf32>, vector<8x32xf32> -> vector<8x32xf32>
    %23 = math.tanh %22 : vector<8x32xf32>
    %24 = vector.shape_cast %0 : vector<8x8x32xf32> to vector<64x32xf32>
    %c0_32 = arith.constant 0 : index
    %c0_33 = arith.constant 0 : index
    %25 = vector.load %arg12[%c0_32, %c0_33] : memref<32x32xf32, #tpu.memory_space<vmem>>, vector<32x32xf32>
    %cst_34 = arith.constant dense<0.000000e+00> : vector<64x32xf32>
    %26 = tpu.matmul %24, %25, %cst_34 {dimension_numbers = #tpu.dot_dimension_numbers<[1], [0], [0], [1], [0, 0, 1, 1], [], []>} : vector<64x32xf32>, vector<32x32xf32>, vector<64x32xf32> -> vector<64x32xf32>
    %27 = vector.shape_cast %26 : vector<64x32xf32> to vector<8x8x32xf32>
    %c0_35 = arith.constant 0 : index
    %c0_36 = arith.constant 0 : index
    %c0_37 = arith.constant 0 : index
    %28 = vector.load %arg0[%c0_35, %c0_36, %c0_37] : memref<7x8x32xf32, #tpu.memory_space<vmem>>, vector<7x8x32xf32>
    %29 = vector.shape_cast %28 : vector<7x8x32xf32> to vector<56x32xf32>
    %c0_38 = arith.constant 0 : index
    %c0_39 = arith.constant 0 : index
    %30 = vector.load %arg4[%c0_38, %c0_39] : memref<32x96xf32, #tpu.memory_space<vmem>>, vector<32x96xf32>
    %cst_40 = arith.constant dense<0.000000e+00> : vector<56x96xf32>
    %31 = tpu.matmul %29, %30, %cst_40 {dimension_numbers = #tpu.dot_dimension_numbers<[1], [0], [0], [1], [0, 0, 1, 1], [], []>} : vector<56x32xf32>, vector<32x96xf32>, vector<56x96xf32> -> vector<56x96xf32>
    %c0_41 = arith.constant 0 : index
    %c0_42 = arith.constant 0 : index
    %32 = vector.load %arg6[%c0_41, %c0_42] : memref<1x96xf32, #tpu.memory_space<vmem>>, vector<1x96xf32>
    %33 = vector.broadcast %32 : vector<1x96xf32> to vector<56x96xf32>
    %34 = arith.addf %31, %33 : vector<56x96xf32>
    %35 = vector.shape_cast %34 : vector<56x96xf32> to vector<7x8x96xf32>
    %c0_43 = arith.constant 0 : index
    %c0_44 = arith.constant 0 : index
    %c0_45 = arith.constant 0 : index
    %36 = vector.load %arg19[%c0_43, %c0_44, %c0_45] : memref<7x8x96xf32, #tpu.memory_space<vmem>>, vector<7x8x96xf32>
    tpu.vector_store %arg19[%c0_43, %c0_44, %c0_45], %35 {strides = array<i32>} : memref<7x8x96xf32, #tpu.memory_space<vmem>>, vector<7x8x96xf32>,
    %c0_i32 = arith.constant 0 : i32
    %c7_i32 = arith.constant 7 : i32
    %37 = arith.addi %c0_i32, %c7_i32 : i32
    %c1_i32 = arith.constant 1 : i32
    %38 = scf.for %arg20 = %c0_i32 to %37 step %c1_i32 iter_args(%arg21 = %23) -> (vector<8x32xf32>)  : i32 {
      %39 = arith.index_cast %arg20 : i32 to index
      %c0_47 = arith.constant 0 : index
      %c0_48 = arith.constant 0 : index
      %40 = vector.load %arg19[%39, %c0_47, %c0_48] : memref<7x8x96xf32, #tpu.memory_space<vmem>>, vector<1x8x96xf32>
      %41 = vector.shape_cast %40 : vector<1x8x96xf32> to vector<8x96xf32>
      %cst_49 = arith.constant dense<0.000000e+00> : vector<8x96xf32>
      %42 = tpu.matmul %arg21, %1, %cst_49 {dimension_numbers = #tpu.dot_dimension_numbers<[1], [0], [0], [1], [0, 0, 1, 1], [], []>} : vector<8x32xf32>, vector<32x96xf32>, vector<8x96xf32> -> vector<8x96xf32>
      %43 = vector.extract_strided_slice %41 {offsets = [0, 0], sizes = [8, 32], strides = [1, 1]} : vector<8x96xf32> to vector<8x32xf32>
      %44 = vector.extract_strided_slice %42 {offsets = [0, 0], sizes = [8, 32], strides = [1, 1]} : vector<8x96xf32> to vector<8x32xf32>
      %45 = arith.addf %43, %44 : vector<8x32xf32>
      %46 = arith.negf %45 : vector<8x32xf32>
      %47 = math.exp %46 : vector<8x32xf32>
      %cst_50 = arith.constant 1.000000e+00 : f32
      %48 = vector.broadcast %cst_50 : f32 to vector<8x32xf32>
      %49 = arith.addf %48, %47 : vector<8x32xf32>
      %50 = arith.divf %48, %49 : vector<8x32xf32>
      %51 = vector.extract_strided_slice %41 {offsets = [0, 32], sizes = [8, 32], strides = [1, 1]} : vector<8x96xf32> to vector<8x32xf32>
      %52 = vector.extract_strided_slice %42 {offsets = [0, 32], sizes = [8, 32], strides = [1, 1]} : vector<8x96xf32> to vector<8x32xf32>
      %53 = arith.addf %51, %52 : vector<8x32xf32>
      %54 = arith.negf %53 : vector<8x32xf32>
      %55 = math.exp %54 : vector<8x32xf32>
      %cst_51 = arith.constant 1.000000e+00 : f32
      %56 = vector.broadcast %cst_51 : f32 to vector<8x32xf32>
      %57 = arith.addf %56, %55 : vector<8x32xf32>
      %58 = arith.divf %56, %57 : vector<8x32xf32>
      %59 = vector.extract_strided_slice %41 {offsets = [0, 64], sizes = [8, 32], strides = [1, 1]} : vector<8x96xf32> to vector<8x32xf32>
      %60 = vector.extract_strided_slice %42 {offsets = [0, 64], sizes = [8, 32], strides = [1, 1]} : vector<8x96xf32> to vector<8x32xf32>
      %61 = vector.broadcast %2 : vector<1x32xf32> to vector<8x32xf32>
      %62 = arith.addf %60, %61 : vector<8x32xf32>
      %63 = arith.mulf %50, %62 : vector<8x32xf32>
      %64 = arith.addf %59, %63 : vector<8x32xf32>
      %65 = math.tanh %64 : vector<8x32xf32>
      %cst_52 = arith.constant 1.000000e+00 : f32
      %66 = vector.broadcast %cst_52 : f32 to vector<8x32xf32>
      %67 = arith.subf %66, %58 : vector<8x32xf32>
      %68 = arith.mulf %67, %65 : vector<8x32xf32>
      %69 = arith.mulf %58, %arg21 : vector<8x32xf32>
      %70 = arith.addf %68, %69 : vector<8x32xf32>
      %cst_53 = arith.constant dense<0.000000e+00> : vector<8x32xf32>
      %71 = tpu.matmul %70, %7, %cst_53 {dimension_numbers = #tpu.dot_dimension_numbers<[1], [0], [0], [1], [0, 0, 1, 1], [], []>} : vector<8x32xf32>, vector<32x32xf32>, vector<8x32xf32> -> vector<8x32xf32>
      %72 = vector.shape_cast %71 : vector<8x32xf32> to vector<1x8x32xf32>
      %73 = vector.broadcast %72 : vector<1x8x32xf32> to vector<8x8x32xf32>
      %74 = arith.addf %27, %73 : vector<8x8x32xf32>
      %75 = math.tanh %74 : vector<8x8x32xf32>
      %76 = vector.shape_cast %75 : vector<8x8x32xf32> to vector<64x32xf32>
      %cst_54 = arith.constant dense<0.000000e+00> : vector<64x1xf32>
      %77 = tpu.matmul %76, %8, %cst_54 {dimension_numbers = #tpu.dot_dimension_numbers<[1], [0], [0], [1], [0, 0, 1, 1], [], []>} : vector<64x32xf32>, vector<32x1xf32>, vector<64x1xf32> -> vector<64x1xf32>
      %78 = vector.shape_cast %77 : vector<64x1xf32> to vector<8x8x1xf32>
      %cst_55 = arith.constant dense<0xFF800000> : vector<8x1xf32>
      %79 = vector.multi_reduction <maximumf>, %78, %cst_55 [0] : vector<8x8x1xf32> to vector<8x1xf32>
      %80 = vector.shape_cast %79 : vector<8x1xf32> to vector<1x8x1xf32>
      %81 = vector.broadcast %80 : vector<1x8x1xf32> to vector<8x8x1xf32>
      %82 = arith.subf %78, %81 : vector<8x8x1xf32>
      %83 = math.exp %82 : vector<8x8x1xf32>
      %cst_56 = arith.constant dense<0.000000e+00> : vector<8x1xf32>
      %84 = vector.multi_reduction <add>, %83, %cst_56 [0] : vector<8x8x1xf32> to vector<8x1xf32>
      %85 = vector.shape_cast %84 : vector<8x1xf32> to vector<1x8x1xf32>
      %86 = vector.broadcast %85 : vector<1x8x1xf32> to vector<8x8x1xf32>
      %87 = arith.divf %83, %86 : vector<8x8x1xf32>
      %88 = vector.broadcast %87 : vector<8x8x1xf32> to vector<8x8x32xf32>
      %89 = arith.mulf %88, %0 : vector<8x8x32xf32>
      %cst_57 = arith.constant dense<0.000000e+00> : vector<8x32xf32>
      %90 = vector.multi_reduction <add>, %89, %cst_57 [0] : vector<8x8x32xf32> to vector<8x32xf32>
      %cst_58 = arith.constant dense<0.000000e+00> : vector<8x32xf32>
      %91 = tpu.matmul %90, %9, %cst_58 {dimension_numbers = #tpu.dot_dimension_numbers<[1], [0], [0], [1], [0, 0, 1, 1], [], []>} : vector<8x32xf32>, vector<32x32xf32>, vector<8x32xf32> -> vector<8x32xf32>
      %cst_59 = arith.constant dense<0.000000e+00> : vector<8x96xf32>
      %92 = tpu.matmul %91, %3, %cst_59 {dimension_numbers = #tpu.dot_dimension_numbers<[1], [0], [0], [1], [0, 0, 1, 1], [], []>} : vector<8x32xf32>, vector<32x96xf32>, vector<8x96xf32> -> vector<8x96xf32>
      %93 = vector.broadcast %5 : vector<1x96xf32> to vector<8x96xf32>
      %94 = arith.addf %92, %93 : vector<8x96xf32>
      %cst_60 = arith.constant dense<0.000000e+00> : vector<8x96xf32>
      %95 = tpu.matmul %70, %4, %cst_60 {dimension_numbers = #tpu.dot_dimension_numbers<[1], [0], [0], [1], [0, 0, 1, 1], [], []>} : vector<8x32xf32>, vector<32x96xf32>, vector<8x96xf32> -> vector<8x96xf32>
      %96 = vector.extract_strided_slice %94 {offsets = [0, 0], sizes = [8, 32], strides = [1, 1]} : vector<8x96xf32> to vector<8x32xf32>
      %97 = vector.extract_strided_slice %95 {offsets = [0, 0], sizes = [8, 32], strides = [1, 1]} : vector<8x96xf32> to vector<8x32xf32>
      %98 = arith.addf %96, %97 : vector<8x32xf32>
      %99 = arith.negf %98 : vector<8x32xf32>
      %100 = math.exp %99 : vector<8x32xf32>
      %cst_61 = arith.constant 1.000000e+00 : f32
      %101 = vector.broadcast %cst_61 : f32 to vector<8x32xf32>
      %102 = arith.addf %101, %100 : vector<8x32xf32>
      %103 = arith.divf %101, %102 : vector<8x32xf32>
      %104 = vector.extract_strided_slice %94 {offsets = [0, 32], sizes = [8, 32], strides = [1, 1]} : vector<8x96xf32> to vector<8x32xf32>
      %105 = vector.extract_strided_slice %95 {offsets = [0, 32], sizes = [8, 32], strides = [1, 1]} : vector<8x96xf32> to vector<8x32xf32>
      %106 = arith.addf %104, %105 : vector<8x32xf32>
      %107 = arith.negf %106 : vector<8x32xf32>
      %108 = math.exp %107 : vector<8x32xf32>
      %cst_62 = arith.constant 1.000000e+00 : f32
      %109 = vector.broadcast %cst_62 : f32 to vector<8x32xf32>
      %110 = arith.addf %109, %108 : vector<8x32xf32>
      %111 = arith.divf %109, %110 : vector<8x32xf32>
      %112 = vector.extract_strided_slice %94 {offsets = [0, 64], sizes = [8, 32], strides = [1, 1]} : vector<8x96xf32> to vector<8x32xf32>
      %113 = vector.extract_strided_slice %95 {offsets = [0, 64], sizes = [8, 32], strides = [1, 1]} : vector<8x96xf32> to vector<8x32xf32>
      %114 = vector.broadcast %6 : vector<1x32xf32> to vector<8x32xf32>
      %115 = arith.addf %113, %114 : vector<8x32xf32>
      %116 = arith.mulf %103, %115 : vector<8x32xf32>
      %117 = arith.addf %112, %116 : vector<8x32xf32>
      %118 = math.tanh %117 : vector<8x32xf32>
      %cst_63 = arith.constant 1.000000e+00 : f32
      %119 = vector.broadcast %cst_63 : f32 to vector<8x32xf32>
      %120 = arith.subf %119, %111 : vector<8x32xf32>
      %121 = arith.mulf %120, %118 : vector<8x32xf32>
      %122 = arith.mulf %111, %70 : vector<8x32xf32>
      %123 = arith.addf %121, %122 : vector<8x32xf32>
      %cst_64 = arith.constant dense<0.000000e+00> : vector<8x32xf32>
      %124 = tpu.matmul %123, %10, %cst_64 {dimension_numbers = #tpu.dot_dimension_numbers<[1], [0], [0], [1], [0, 0, 1, 1], [], []>} : vector<8x32xf32>, vector<32x32xf32>, vector<8x32xf32> -> vector<8x32xf32>
      %125 = vector.broadcast %11 : vector<1x32xf32> to vector<8x32xf32>
      %126 = arith.addf %124, %125 : vector<8x32xf32>
      %127 = math.tanh %126 : vector<8x32xf32>
      %128 = arith.index_cast %arg20 : i32 to index
      %c0_65 = arith.constant 0 : index
      %c0_66 = arith.constant 0 : index
      %129 = vector.load %arg18[%128, %c0_65, %c0_66] : memref<7x8x32xf32, #tpu.memory_space<vmem>>, vector<1x8x32xf32>
      %130 = vector.shape_cast %129 : vector<1x8x32xf32> to vector<8x32xf32>
      %131 = vector.shape_cast %127 : vector<8x32xf32> to vector<1x8x32xf32>
      tpu.vector_store %arg18[%128, %c0_65, %c0_66], %131 {strides = array<i32>} : memref<7x8x32xf32, #tpu.memory_space<vmem>>, vector<1x8x32xf32>,
      scf.yield %123 : vector<8x32xf32>
    }
    %c7_i32_46 = arith.constant 7 : i32
    return
  }
}

</mosaic_0001>

<llo_original>
// kernel: tpu_custom_call.1
$region0: #{tpu_custom_call.1}
  #allocation0 [shape = 'u32[]', space=smem, size = 0x4, offset = 0x4, fixed_abs, tag = 'smem constant byte address 0x4 - core index']
  #allocation1 [shape = 'u32[144,128]{1,0:T(1,128)}', space=vmem, size = 0x12000, scoped, tag = 'internal scratch']
  #allocation2 [shape = 'f32[7,8,96]{2,1,0:T(8,128)}', space=vmem, size = 0x7000, scoped, tag = 'scratch operand']
  %s0 = inlined_call_operand.hbm [shape: f32[7,8,32], index: 0, kind: input, shape index: {}]
  %s1 = inlined_call_operand.hbm [shape: f32[8,8,32], index: 1, kind: input, shape index: {}]
  %s2 = inlined_call_operand.hbm [shape: f32[8,32], index: 2, kind: input, shape index: {}]
  %s3 = inlined_call_operand.vmem [shape: f32[32,32], index: 3, kind: input, shape index: {}]
  %s4 = inlined_call_operand.hbm [shape: f32[32,96], index: 4, kind: input, shape index: {}]
  %s5 = inlined_call_operand.hbm [shape: f32[32,96], index: 5, kind: input, shape index: {}]
  %s6 = inlined_call_operand.vmem [shape: f32[1,96], index: 6, kind: input, shape index: {}]
  %s7 = inlined_call_operand.vmem [shape: f32[1,32], index: 7, kind: input, shape index: {}]
  %s8 = inlined_call_operand.hbm [shape: f32[32,96], index: 8, kind: input, shape index: {}]
  %s9 = inlined_call_operand.vmem [shape: f32[32,96], index: 9, kind: input, shape index: {}]
  %s10 = inlined_call_operand.vmem [shape: f32[1,96], index: 10, kind: input, shape index: {}]
  %s11 = inlined_call_operand.vmem [shape: f32[1,32], index: 11, kind: input, shape index: {}]
  %s12 = inlined_call_operand.hbm [shape: f32[32,32], index: 12, kind: input, shape index: {}]
  %s13 = inlined_call_operand.hbm [shape: f32[32,32], index: 13, kind: input, shape index: {}]
  %s14 = inlined_call_operand.vmem [shape: f32[32,1], index: 14, kind: input, shape index: {}]
  %s15 = inlined_call_operand.hbm [shape: f32[32,32], index: 15, kind: input, shape index: {}]
  %s16 = inlined_call_operand.hbm [shape: f32[32,32], index: 16, kind: input, shape index: {}]
  %s17 = inlined_call_operand.vmem [shape: f32[1,32], index: 17, kind: input, shape index: {}]
  %s18 = inlined_call_operand.hbm [shape: f32[7,8,32], index: 18, kind: output, shape index: {}]
  %s19 = sld [smem:[#allocation0]]
  $region129: #{tpu_custom_call.1} parent=0
    _
  %s21 = ssub.s32 1, %s19
  %s22 = scalar_select 0, %s21, %s19
  $region1: #{tpu_custom_call.1} parent=0
    #allocation3 [shape = 'u8[28672]{0}', space=vmem, size = 0x7000, scoped, tag = 'input window, operand 0, single buffered']
    #allocation4 [shape = 's32[1]{0}', space=sflag, size = 0x4, scoped, tag = 'scoped memory for tpu_custom_call.1']
    #allocation5 [shape = 's32[1]{0}', space=sflag, size = 0x4, scoped, tag = 'scoped memory for tpu_custom_call.1']
    #allocation6 [shape = 'u8[32768]{0}', space=vmem, size = 0x8000, scoped, tag = 'input window, operand 1, single buffered']
    #allocation7 [shape = 's32[1]{0}', space=sflag, size = 0x4, scoped, tag = 'scoped memory for tpu_custom_call.1']
    #allocation8 [shape = 'u8[4096]{0}', space=vmem, size = 0x1000, scoped, tag = 'input window, operand 2, single buffered']
    #allocation9 [shape = 'u8[16384]{0}', space=vmem, size = 0x4000, scoped, tag = 'input window, operand 4, single buffered']
    #allocation10 [shape = 's32[1]{0}', space=sflag, size = 0x4, scoped, tag = 'scoped memory for tpu_custom_call.1']
    #allocation11 [shape = 'u8[16384]{0}', space=vmem, size = 0x4000, scoped, tag = 'input window, operand 5, single buffered']
    #allocation12 [shape = 'u8[16384]{0}', space=vmem, size = 0x4000, scoped, tag = 'input window, operand 8, single buffered']
    #allocation13 [shape = 's32[1]{0}', space=sflag, size = 0x4, scoped, tag = 'scoped memory for tpu_custom_call.1']
    #allocation14 [shape = 'u8[16384]{0}', space=vmem, size = 0x4000, scoped, tag = 'input window, operand 12, single buffered']
    #allocation15 [shape = 'u8[16384]{0}', space=vmem, size = 0x4000, scoped, tag = 'input window, operand 13, single buffered']
    #allocation16 [shape = 's32[1]{0}', space=sflag, size = 0x4, scoped, tag = 'scoped memory for tpu_custom_call.1']
    #allocation17 [shape = 'u8[16384]{0}', space=vmem, size = 0x4000, scoped, tag = 'input window, operand 15, single buffered']
    #allocation18 [shape = 'u8[16384]{0}', space=vmem, size = 0x4000, scoped, tag = 'input window, operand 16, single buffered']
    #allocation19 [shape = 's32[1]{0}', space=sflag, size = 0x4, scoped, tag = 'scoped memory for tpu_custom_call.1']
    #allocation20 [shape = 'u8[28672]{0}', space=vmem, size = 0x7000, scoped, tag = 'output window, operand 0, single buffered']
    %23 = vsyncpa [#allocation4], 0
    %24 = vsyncpa [#allocation7], 0
    %25 = vsyncpa [#allocation10], 0
    %26 = vsyncpa [#allocation13], 0
    %27 = vsyncpa [#allocation16], 0
    %28 = vsyncpa [#allocation19], 0
    %29 = vsyncpa [#allocation5], 0
    // Predicated region
    $region2: #{tpu_custom_call.1} parent=1 // pred_check
      _
    $region3: #{tpu_custom_call.1} parent=1 // pred_check_branch
      %31 = sbr.rel (0) target = $region5
    $region4: #{tpu_custom_call.1} parent=1 // pred_region
      %s33 = ssub.s32 896, 896
      %34 = vsyncadd [#allocation4], %s33
      %s35 = sshll.u32 [#allocation3], 4
      %s36 = int_to_ptr.vmem [resolvable:$true] %s35
      %41 = dma.hbm_to_vmem [thread:$0]  %s0, 896, %s36, [#allocation4], 128, 128, 8
    $region5: #{tpu_custom_call.1} parent=1 // pred_fallthru
      _
    // Predicated region
    $region6: #{tpu_custom_call.1} parent=1 // pred_check
      _
    $region7: #{tpu_custom_call.1} parent=1 // pred_check_branch
      %43 = sbr.rel (0) target = $region9
    $region8: #{tpu_custom_call.1} parent=1 // pred_region
      %s45 = ssub.s32 1024, 1024
      %46 = vsyncadd [#allocation7], %s45
      %s47 = sshll.u32 [#allocation6], 4
      %s48 = int_to_ptr.vmem [resolvable:$true] %s47
      %53 = dma.hbm_to_vmem [thread:$0]  %s1, 1024, %s48, [#allocation7], 128, 128, 8
    $region9: #{tpu_custom_call.1} parent=1 // pred_fallthru
      _
    // Predicated region
    $region10: #{tpu_custom_call.1} parent=1 // pred_check
      _
    $region11: #{tpu_custom_call.1} parent=1 // pred_check_branch
      %55 = sbr.rel (0) target = $region13
    $region12: #{tpu_custom_call.1} parent=1 // pred_region
      %s57 = ssub.s32 128, 128
      %58 = vsyncadd [#allocation7], %s57
      %s60 = sshll.u32 [#allocation8], 4
      %s61 = int_to_ptr.vmem [resolvable:$true] %s60
      %63 = dma.hbm_to_vmem [thread:$0]  %s2, 128, %s61, [#allocation7]
    $region13: #{tpu_custom_call.1} parent=1 // pred_fallthru
      _
    // Predicated region
    $region14: #{tpu_custom_call.1} parent=1 // pred_check
      _
    $region15: #{tpu_custom_call.1} parent=1 // pred_check_branch
      %65 = sbr.rel (0) target = $region17
    $region16: #{tpu_custom_call.1} parent=1 // pred_region
      _
    $region17: #{tpu_custom_call.1} parent=1 // pred_fallthru
      _
    // Predicated region
    $region18: #{tpu_custom_call.1} parent=1 // pred_check
      _
    $region19: #{tpu_custom_call.1} parent=1 // pred_check_branch
      %67 = sbr.rel (0) target = $region21
    $region20: #{tpu_custom_call.1} parent=1 // pred_region
      %s69 = ssub.s32 512, 512
      %70 = vsyncadd [#allocation10], %s69
      %s71 = sshll.u32 [#allocation9], 4
      %s72 = int_to_ptr.vmem [resolvable:$true] %s71
      %77 = dma.hbm_to_vmem [thread:$0]  %s4, 512, %s72, [#allocation10], 128, 128, 8
    $region21: #{tpu_custom_call.1} parent=1 // pred_fallthru
      _
    // Predicated region
    $region22: #{tpu_custom_call.1} parent=1 // pred_check
      _
    $region23: #{tpu_custom_call.1} parent=1 // pred_check_branch
      %79 = sbr.rel (0) target = $region25
    $region24: #{tpu_custom_call.1} parent=1 // pred_region
      %s81 = ssub.s32 512, 512
      %82 = vsyncadd [#allocation10], %s81
      %s83 = sshll.u32 [#allocation11], 4
      %s84 = int_to_ptr.vmem [resolvable:$true] %s83
      %89 = dma.hbm_to_vmem [thread:$0]  %s5, 512, %s84, [#allocation10], 128, 128, 8
    $region25: #{tpu_custom_call.1} parent=1 // pred_fallthru
      _
    // Predicated region
    $region26: #{tpu_custom_call.1} parent=1 // pred_check
      _
    $region27: #{tpu_custom_call.1} parent=1 // pred_check_branch
      %91 = sbr.rel (0) target = $region29
    $region28: #{tpu_custom_call.1} parent=1 // pred_region
      _
    $region29: #{tpu_custom_call.1} parent=1 // pred_fallthru
      _
    // Predicated region
    $region30: #{tpu_custom_call.1} parent=1 // pred_check
      _
    $region31: #{tpu_custom_call.1} parent=1 // pred_check_branch
      %93 = sbr.rel (0) target = $region33
    $region32: #{tpu_custom_call.1} parent=1 // pred_region
      _
    $region33: #{tpu_custom_call.1} parent=1 // pred_fallthru
      _
    // Predicated region
    $region34: #{tpu_custom_call.1} parent=1 // pred_check
      _
    $region35: #{tpu_custom_call.1} parent=1 // pred_check_branch
      %95 = sbr.rel (0) target = $region37
    $region36: #{tpu_custom_call.1} parent=1 // pred_region
      %s97 = ssub.s32 512, 512
      %98 = vsyncadd [#allocation13], %s97
      %s99 = sshll.u32 [#allocation12], 4
      %s100 = int_to_ptr.vmem [resolvable:$true] %s99
      %105 = dma.hbm_to_vmem [thread:$0]  %s8, 512, %s100, [#allocation13], 128, 128, 8
    $region37: #{tpu_custom_call.1} parent=1 // pred_fallthru
      _
    // Predicated region
    $region38: #{tpu_custom_call.1} parent=1 // pred_check
      _
    $region39: #{tpu_custom_call.1} parent=1 // pred_check_branch
      %107 = sbr.rel (0) target = $region41
    $region40: #{tpu_custom_call.1} parent=1 // pred_region
      _
    $region41: #{tpu_custom_call.1} parent=1 // pred_fallthru
      _
    // Predicated region
    $region42: #{tpu_custom_call.1} parent=1 // pred_check
      _
    $region43: #{tpu_custom_call.1} parent=1 // pred_check_branch
      %109 = sbr.rel (0) target = $region45
    $region44: #{tpu_custom_call.1} parent=1 // pred_region
      _
    $region45: #{tpu_custom_call.1} parent=1 // pred_fallthru
      _
    // Predicated region
    $region46: #{tpu_custom_call.1} parent=1 // pred_check
      _
    $region47: #{tpu_custom_call.1} parent=1 // pred_check_branch
      %111 = sbr.rel (0) target = $region49
    $region48: #{tpu_custom_call.1} parent=1 // pred_region
      _
    $region49: #{tpu_custom_call.1} parent=1 // pred_fallthru
      _
    // Predicated region
    $region50: #{tpu_custom_call.1} parent=1 // pred_check
      _
    $region51: #{tpu_custom_call.1} parent=1 // pred_check_branch
      %113 = sbr.rel (0) target = $region53
    $region52: #{tpu_custom_call.1} parent=1 // pred_region
      %s115 = ssub.s32 512, 512
      %116 = vsyncadd [#allocation13], %s115
      %s117 = sshll.u32 [#allocation14], 4
      %s118 = int_to_ptr.vmem [resolvable:$true] %s117
      %123 = dma.hbm_to_vmem [thread:$0]  %s12, 512, %s118, [#allocation13], 128, 128, 8
    $region53: #{tpu_custom_call.1} parent=1 // pred_fallthru
      _
    // Predicated region
    $region54: #{tpu_custom_call.1} parent=1 // pred_check
      _
    $region55: #{tpu_custom_call.1} parent=1 // pred_check_branch
      %125 = sbr.rel (0) target = $region57
    $region56: #{tpu_custom_call.1} parent=1 // pred_region
      %s127 = ssub.s32 512, 512
      %128 = vsyncadd [#allocation16], %s127
      %s129 = sshll.u32 [#allocation15], 4
      %s130 = int_to_ptr.vmem [resolvable:$true] %s129
      %135 = dma.hbm_to_vmem [thread:$0]  %s13, 512, %s130, [#allocation16], 128, 128, 8
    $region57: #{tpu_custom_call.1} parent=1 // pred_fallthru
      _
    // Predicated region
    $region58: #{tpu_custom_call.1} parent=1 // pred_check
      _
    $region59: #{tpu_custom_call.1} parent=1 // pred_check_branch
      %137 = sbr.rel (0) target = $region61
    $region60: #{tpu_custom_call.1} parent=1 // pred_region
      _
    $region61: #{tpu_custom_call.1} parent=1 // pred_fallthru
      _
    // Predicated region
    $region62: #{tpu_custom_call.1} parent=1 // pred_check
      _
    $region63: #{tpu_custom_call.1} parent=1 // pred_check_branch
      %139 = sbr.rel (0) target = $region65
    $region64: #{tpu_custom_call.1} parent=1 // pred_region
      %s141 = ssub.s32 512, 512
      %142 = vsyncadd [#allocation16], %s141
      %s143 = sshll.u32 [#allocation17], 4
      %s144 = int_to_ptr.vmem [resolvable:$true] %s143
      %149 = dma.hbm_to_vmem [thread:$0]  %s15, 512, %s144, [#allocation16], 128, 128, 8
    $region65: #{tpu_custom_call.1} parent=1 // pred_fallthru
      _
    // Predicated region
    $region66: #{tpu_custom_call.1} parent=1 // pred_check
      _
    $region67: #{tpu_custom_call.1} parent=1 // pred_check_branch
      %151 = sbr.rel (0) target = $region69
    $region68: #{tpu_custom_call.1} parent=1 // pred_region
      %s153 = ssub.s32 512, 512
      %154 = vsyncadd [#allocation19], %s153
      %s155 = sshll.u32 [#allocation18], 4
      %s156 = int_to_ptr.vmem [resolvable:$true] %s155
      %161 = dma.hbm_to_vmem [thread:$0]  %s16, 512, %s156, [#allocation19], 128, 128, 8
    $region69: #{tpu_custom_call.1} parent=1 // pred_fallthru
      _
    // Predicated region
    $region70: #{tpu_custom_call.1} parent=1 // pred_check
      _
    $region71: #{tpu_custom_call.1} parent=1 // pred_check_branch
      %163 = sbr.rel (0) target = $region73
    $region72: #{tpu_custom_call.1} parent=1 // pred_region
      _
    $region73: #{tpu_custom_call.1} parent=1 // pred_fallthru
      _
    // Predicated region
    $region74: #{tpu_custom_call.1} parent=1 // pred_check
      _
    $region75: #{tpu_custom_call.1} parent=1 // pred_check_branch
      %165 = sbr.rel (0) target = $region77
    $region76: #{tpu_custom_call.1} parent=1 // pred_region
      %166 = dma.done [#allocation4], 896
    $region77: #{tpu_custom_call.1} parent=1 // pred_fallthru
      _
    // Predicated region
    $region78: #{tpu_custom_call.1} parent=1 // pred_check
      _
    $region79: #{tpu_custom_call.1} parent=1 // pred_check_branch
      %168 = sbr.rel (0) target = $region81
    $region80: #{tpu_custom_call.1} parent=1 // pred_region
      %169 = dma.done [#allocation7], 1024
    $region81: #{tpu_custom_call.1} parent=1 // pred_fallthru
      _
    // Predicated region
    $region82: #{tpu_custom_call.1} parent=1 // pred_check
      _
    $region83: #{tpu_custom_call.1} parent=1 // pred_check_branch
      %171 = sbr.rel (0) target = $region85
    $region84: #{tpu_custom_call.1} parent=1 // pred_region
      %172 = dma.done [#allocation7], 128
    $region85: #{tpu_custom_call.1} parent=1 // pred_fallthru
      _
    // Predicated region
    $region86: #{tpu_custom_call.1} parent=1 // pred_check
      _
    $region87: #{tpu_custom_call.1} parent=1 // pred_check_branch
      %174 = sbr.rel (0) target = $region89
    $region88: #{tpu_custom_call.1} parent=1 // pred_region
      %175 = dma.done [#allocation10], 512
    $region89: #{tpu_custom_call.1} parent=1 // pred_fallthru
      _
    // Predicated region
    $region90: #{tpu_custom_call.1} parent=1 // pred_check
      _
    $region91: #{tpu_custom_call.1} parent=1 // pred_check_branch
      %177 = sbr.rel (0) target = $region93
    $region92: #{tpu_custom_call.1} parent=1 // pred_region
      %178 = dma.done [#allocation10], 512
    $region93: #{tpu_custom_call.1} parent=1 // pred_fallthru
      _
    // Predicated region
    $region94: #{tpu_custom_call.1} parent=1 // pred_check
      _
    $region95: #{tpu_custom_call.1} parent=1 // pred_check_branch
      %180 = sbr.rel (0) target = $region97
    $region96: #{tpu_custom_call.1} parent=1 // pred_region
      %181 = dma.done [#allocation13], 512
    $region97: #{tpu_custom_call.1} parent=1 // pred_fallthru
      _
    // Predicated region
    $region98: #{tpu_custom_call.1} parent=1 // pred_check
      _
    $region99: #{tpu_custom_call.1} parent=1 // pred_check_branch
      %183 = sbr.rel (0) target = $region101
    $region100: #{tpu_custom_call.1} parent=1 // pred_region
      %184 = dma.done [#allocation13], 512
    $region101: #{tpu_custom_call.1} parent=1 // pred_fallthru
      _
    // Predicated region
    $region102: #{tpu_custom_call.1} parent=1 // pred_check
      _
    $region103: #{tpu_custom_call.1} parent=1 // pred_check_branch
      %186 = sbr.rel (0) target = $region105
    $region104: #{tpu_custom_call.1} parent=1 // pred_region
      %187 = dma.done [#allocation16], 512
    $region105: #{tpu_custom_call.1} parent=1 // pred_fallthru
      _
    // Predicated region
    $region106: #{tpu_custom_call.1} parent=1 // pred_check
      _
    $region107: #{tpu_custom_call.1} parent=1 // pred_check_branch
      %189 = sbr.rel (0) target = $region109
    $region108: #{tpu_custom_call.1} parent=1 // pred_region
      %190 = dma.done [#allocation16], 512
    $region109: #{tpu_custom_call.1} parent=1 // pred_fallthru
      _
    // Predicated region
    $region110: #{tpu_custom_call.1} parent=1 // pred_check
      _
    $region111: #{tpu_custom_call.1} parent=1 // pred_check_branch
      %192 = sbr.rel (0) target = $region113
    $region112: #{tpu_custom_call.1} parent=1 // pred_region
      %193 = dma.done [#allocation19], 512
    $region113: #{tpu_custom_call.1} parent=1 // pred_fallthru
      _
    %v194 = vld [vmem:[#allocation6] sm:$0xff]
    %v195 = vld [vmem:[#allocation6 + $0x8] sm:$0xff]
    %v196 = vld [vmem:[#allocation6 + $0x10] sm:$0xff]
    %v197 = vld [vmem:[#allocation6 + $0x18] sm:$0xff]
    %v198 = vld [vmem:[#allocation6 + $0x20] sm:$0xff]
    %v199 = vld [vmem:[#allocation6 + $0x28] sm:$0xff]
    %v200 = vld [vmem:[#allocation6 + $0x30] sm:$0xff]
    %v201 = vld [vmem:[#allocation6 + $0x38] sm:$0xff]
    %v202 = vld [vmem:[#allocation11] sm:$0xff]
    %v203 = vld [vmem:[#allocation11 + $0x8] sm:$0xff]
    %v204 = vld [vmem:[#allocation11 + $0x10] sm:$0xff]
    %v205 = vld [vmem:[#allocation11 + $0x18] sm:$0xff]
    %v206 = vld [vmem:[%s7] sm:$0x1]
    %v207 = vld [vmem:[#allocation12] sm:$0xff]
    %v208 = vld [vmem:[#allocation12 + $0x8] sm:$0xff]
    %v209 = vld [vmem:[#allocation12 + $0x10] sm:$0xff]
    %v210 = vld [vmem:[#allocation12 + $0x18] sm:$0xff]
    %v211 = vld [vmem:[%s9] sm:$0xff]
    %v212 = vld [vmem:[%s9 + $0x8] sm:$0xff]
    %v213 = vld [vmem:[%s9 + $0x10] sm:$0xff]
    %v214 = vld [vmem:[%s9 + $0x18] sm:$0xff]
    %v215 = vld [vmem:[%s10] sm:$0x1]
    %v216 = vld [vmem:[%s11] sm:$0x1]
    %v217 = vld [vmem:[#allocation15] sm:$0xff]
    %v218 = vld [vmem:[#allocation15 + $0x8] sm:$0xff]
    %v219 = vld [vmem:[#allocation15 + $0x10] sm:$0xff]
    %v220 = vld [vmem:[#allocation15 + $0x18] sm:$0xff]
    %v221 = vld [vmem:[%s14] sm:$0xff]
    %v222 = vld [vmem:[%s14 + $0x8] sm:$0xff]
    %v223 = vld [vmem:[%s14 + $0x10] sm:$0xff]
    %v224 = vld [vmem:[%s14 + $0x18] sm:$0xff]
    %v225 = vld [vmem:[#allocation17] sm:$0xff]
    %v226 = vld [vmem:[#allocation17 + $0x8] sm:$0xff]
    %v227 = vld [vmem:[#allocation17 + $0x10] sm:$0xff]
    %v228 = vld [vmem:[#allocation17 + $0x18] sm:$0xff]
    %v229 = vld [vmem:[#allocation18] sm:$0xff]
    %v230 = vld [vmem:[#allocation18 + $0x8] sm:$0xff]
    %v231 = vld [vmem:[#allocation18 + $0x10] sm:$0xff]
    %v232 = vld [vmem:[#allocation18 + $0x18] sm:$0xff]
    %v233 = vld [vmem:[%s17] sm:$0x1]
    %vm234 = vcmask 261120
    %v235 = vsel %vm234, %v194, 0.0
    %v236 = vsel %vm234, %v195, 0.0
    %v237 = vadd.f32 %v235, %v236
    %v238 = vsel %vm234, %v196, 0.0
    %v239 = vadd.f32 %v237, %v238
    %v240 = vsel %vm234, %v197, 0.0
    %v241 = vadd.f32 %v239, %v240
    %v242 = vsel %vm234, %v198, 0.0
    %v243 = vadd.f32 %v241, %v242
    %v244 = vsel %vm234, %v199, 0.0
    %v245 = vadd.f32 %v243, %v244
    %v246 = vsel %vm234, %v200, 0.0
    %v247 = vadd.f32 %v245, %v246
    %v248 = vsel %vm234, %v201, 0.0
    %v249 = vadd.f32 %v247, %v248
    %v250 = vrcp.pop 8.0
    %v251 = vmul.f32 %v249, %v250
    %v252 = vmul.f32 %v251, 0.5
    %v253 = vld [vmem:[#allocation8] sm:$0xff]
    %v254 = vmul.f32 %v253, 0.5
    %v255 = vadd.f32 %v252, %v254
    %v256 = vld [vmem:[%s3] sm:$0xff]
    %v257 = vld [vmem:[%s3 + $0x8] sm:$0xff]
    %v258 = vld [vmem:[%s3 + $0x10] sm:$0xff]
    %v259 = vld [vmem:[%s3 + $0x18] sm:$0xff]
    %v261 = vsel %vm234, %v255, 0
    %263 = vmatprep.subr.mxu0 0.0
    %264 = vmatpush1.msra.mxu0 %v256
    %265 = vmatprep.subr.mxu0 0.0
    %266 = vmatpush1.msra.mxu0 %v257
    %267 = vmatprep.subr.mxu0 0.0
    %268 = vmatpush1.msra.mxu0 %v258
    %269 = vmatprep.subr.mxu0 0.0
    %270 = vmatpush1.msra.mxu0 %v259
    %271 = vmatprep.subr.mxu0 0.0
    %272 = vmatpush1.msra.mxu0 0.0
    %273 = vmatprep.subr.mxu0 0.0
    %274 = vmatpush1.msra.mxu0 0.0
    %275 = vmatprep.subr.mxu0 0.0
    %276 = vmatpush1.msra.mxu0 0.0
    %277 = vmatprep.subr.mxu0 0.0
    %278 = vmatpush1.msra.mxu0 0.0
    %279 = vmatprep.subr.mxu0 0.0
    %280 = vmatpush1.msra.mxu0 0.0
    %281 = vmatprep.subr.mxu0 0.0
    %282 = vmatpush1.msra.mxu0 0.0
    %283 = vmatprep.subr.mxu0 0.0
    %284 = vmatpush1.msra.mxu0 0.0
    %285 = vmatprep.subr.mxu0 0.0
    %286 = vmatpush1.msra.mxu0 0.0
    %287 = vmatprep.subr.mxu0 0.0
    %288 = vmatpush1.msra.mxu0 0.0
    %289 = vmatprep.subr.mxu0 0.0
    %290 = vmatpush1.msra.mxu0 0.0
    %291 = vmatprep.subr.mxu0 0.0
    %292 = vmatpush1.msra.mxu0 0.0
    %293 = vmatprep.subr.mxu0 0.0
    %294 = vmatpush1.msra.mxu0 0.0
    %295 = vmatprep.subr.mxu0 0.0
    %296 = vmatpush1.msra.mxu0 0.0
    %297 = vmatprep.subr.mxu0 0.0
    %298 = vmatpush1.msra.mxu0 0.0
    %299 = vmatprep.subr.mxu0 0.0
    %300 = vmatpush1.msra.mxu0 0.0
    %301 = vmatprep.subr.mxu0 0.0
    %302 = vmatpush1.msra.mxu0 0.0
    %303 = vmatprep.subr.mxu0 0.0
    %304 = vmatpush1.msra.mxu0 0.0
    %305 = vmatprep.subr.mxu0 0.0
    %306 = vmatpush1.msra.mxu0 0.0
    %307 = vmatprep.subr.mxu0 0.0
    %308 = vmatpush1.msra.mxu0 0.0
    %309 = vmatprep.subr.mxu0 0.0
    %310 = vmatpush1.msra.mxu0 0.0
    %311 = vmatprep.subr.mxu0 0.0
    %312 = vmatpush1.msra.mxu0 0.0
    %313 = vmatprep.subr.mxu0 0.0
    %314 = vmatpush1.msra.mxu0 0.0
    %315 = vmatprep.subr.mxu0 0.0
    %316 = vmatpush1.msra.mxu0 0.0
    %317 = vmatprep.subr.mxu0 0.0
    %318 = vmatpush1.msra.mxu0 0.0
    %319 = vmatprep.subr.mxu0 0.0
    %320 = vmatpush1.msra.mxu0 0.0
    %321 = vmatprep.subr.mxu0 0.0
    %322 = vmatpush1.msra.mxu0 0.0
    %323 = vmatprep.subr.mxu0 0.0
    %324 = vmatpush1.msra.mxu0 0.0
    %325 = vmatprep.subr.mxu0 0.0
    %326 = vmatpush1.msra.mxu0 0.0
    %327 = vmatprep.mubr.f32.mxu0 0.0
    %328 = vmatmul.mubr.f32.gmra.mrb[0].mxu0 %v261
    %v329 = vpop.f32.mrb[0].mxu0
    %v330 = vadd.f32 0.0, %v329
    %v331 = vpop.f32.mrb[0].mxu0
    %332 = vdwg.mxu0
    %v333 = vtanh.pop %v330
    %v334 = vld [vmem:[#allocation14] sm:$0xff]
    %v335 = vld [vmem:[#allocation14 + $0x8] sm:$0xff]
    %v336 = vld [vmem:[#allocation14 + $0x10] sm:$0xff]
    %v337 = vld [vmem:[#allocation14 + $0x18] sm:$0xff]
    %v339 = vsel %vm234, %v194, 0
    %v342 = vsel %vm234, %v195, 0
    %v345 = vsel %vm234, %v196, 0
    %v348 = vsel %vm234, %v197, 0
    %v351 = vsel %vm234, %v198, 0
    %v354 = vsel %vm234, %v199, 0
    %v357 = vsel %vm234, %v200, 0
    %v360 = vsel %vm234, %v201, 0
    %362 = vmatprep.subr.mxu0 0.0
    %363 = vmatpush1.msra.mxu0 %v334
    %364 = vmatprep.subr.mxu0 0.0
    %365 = vmatpush1.msra.mxu0 %v335
    %366 = vmatprep.subr.mxu0 0.0
    %367 = vmatpush1.msra.mxu0 %v336
    %368 = vmatprep.subr.mxu0 0.0
    %369 = vmatpush1.msra.mxu0 %v337
    %370 = vmatprep.subr.mxu0 0.0
    %371 = vmatpush1.msra.mxu0 0.0
    %372 = vmatprep.subr.mxu0 0.0
    %373 = vmatpush1.msra.mxu0 0.0
    %374 = vmatprep.subr.mxu0 0.0
    %375 = vmatpush1.msra.mxu0 0.0
    %376 = vmatprep.subr.mxu0 0.0
    %377 = vmatpush1.msra.mxu0 0.0
    %378 = vmatprep.subr.mxu0 0.0
    %379 = vmatpush1.msra.mxu0 0.0
    %380 = vmatprep.subr.mxu0 0.0
    %381 = vmatpush1.msra.mxu0 0.0
    %382 = vmatprep.subr.mxu0 0.0
    %383 = vmatpush1.msra.mxu0 0.0
    %384 = vmatprep.subr.mxu0 0.0
    %385 = vmatpush1.msra.mxu0 0.0
    %386 = vmatprep.subr.mxu0 0.0
    %387 = vmatpush1.msra.mxu0 0.0
    %388 = vmatprep.subr.mxu0 0.0
    %389 = vmatpush1.msra.mxu0 0.0
    %390 = vmatprep.subr.mxu0 0.0
    %391 = vmatpush1.msra.mxu0 0.0
    %392 = vmatprep.subr.mxu0 0.0
    %393 = vmatpush1.msra.mxu0 0.0
    %394 = vmatprep.subr.mxu0 0.0
    %395 = vmatpush1.msra.mxu0 0.0
    %396 = vmatprep.subr.mxu0 0.0
    %397 = vmatpush1.msra.mxu0 0.0
    %398 = vmatprep.subr.mxu0 0.0
    %399 = vmatpush1.msra.mxu0 0.0
    %400 = vmatprep.subr.mxu0 0.0
    %401 = vmatpush1.msra.mxu0 0.0
    %402 = vmatprep.subr.mxu0 0.0
    %403 = vmatpush1.msra.mxu0 0.0
    %404 = vmatprep.subr.mxu0 0.0
    %405 = vmatpush1.msra.mxu0 0.0
    %406 = vmatprep.subr.mxu0 0.0
    %407 = vmatpush1.msra.mxu0 0.0
    %408 = vmatprep.subr.mxu0 0.0
    %409 = vmatpush1.msra.mxu0 0.0
    %410 = vmatprep.subr.mxu0 0.0
    %411 = vmatpush1.msra.mxu0 0.0
    %412 = vmatprep.subr.mxu0 0.0
    %413 = vmatpush1.msra.mxu0 0.0
    %414 = vmatprep.subr.mxu0 0.0
    %415 = vmatpush1.msra.mxu0 0.0
    %416 = vmatprep.subr.mxu0 0.0
    %417 = vmatpush1.msra.mxu0 0.0
    %418 = vmatprep.subr.mxu0 0.0
    %419 = vmatpush1.msra.mxu0 0.0
    %420 = vmatprep.subr.mxu0 0.0
    %421 = vmatpush1.msra.mxu0 0.0
    %422 = vmatprep.subr.mxu0 0.0
    %423 = vmatpush1.msra.mxu0 0.0
    %424 = vmatprep.subr.mxu0 0.0
    %425 = vmatpush1.msra.mxu0 0.0
    %426 = vmatprep.mubr.f32.mxu0 0.0
    %427 = vmatmul.mubr.f32.gmra.mrb[0].mxu0 %v339
    %v428 = vpop.f32.mrb[0].mxu0
    %v429 = vadd.f32 0.0, %v428
    %v430 = vpop.f32.mrb[0].mxu0
    %431 = vmatprep.mubr.f32.mxu0 0.0
    %432 = vmatmul.mubr.f32.gmra.mrb[0].mxu0 %v342
    %v433 = vpop.f32.mrb[0].mxu0
    %v434 = vadd.f32 0.0, %v433
    %v435 = vpop.f32.mrb[0].mxu0
    %436 = vmatprep.mubr.f32.mxu0 0.0
    %437 = vmatmul.mubr.f32.gmra.mrb[0].mxu0 %v345
    %v438 = vpop.f32.mrb[0].mxu0
    %v439 = vadd.f32 0.0, %v438
    %v440 = vpop.f32.mrb[0].mxu0
    %441 = vmatprep.mubr.f32.mxu0 0.0
    %442 = vmatmul.mubr.f32.gmra.mrb[0].mxu0 %v348
    %v443 = vpop.f32.mrb[0].mxu0
    %v444 = vadd.f32 0.0, %v443
    %v445 = vpop.f32.mrb[0].mxu0
    %446 = vmatprep.mubr.f32.mxu0 0.0
    %447 = vmatmul.mubr.f32.gmra.mrb[0].mxu0 %v351
    %v448 = vpop.f32.mrb[0].mxu0
    %v449 = vadd.f32 0.0, %v448
    %v450 = vpop.f32.mrb[0].mxu0
    %451 = vmatprep.mubr.f32.mxu0 0.0
    %452 = vmatmul.mubr.f32.gmra.mrb[0].mxu0 %v354
    %v453 = vpop.f32.mrb[0].mxu0
    %v454 = vadd.f32 0.0, %v453
    %v455 = vpop.f32.mrb[0].mxu0
    %456 = vmatprep.mubr.f32.mxu0 0.0
    %457 = vmatmul.mubr.f32.gmra.mrb[0].mxu0 %v357
    %v458 = vpop.f32.mrb[0].mxu0
    %v459 = vadd.f32 0.0, %v458
    %v460 = vpop.f32.mrb[0].mxu0
    %461 = vmatprep.mubr.f32.mxu0 0.0
    %462 = vmatmul.mubr.f32.gmra.mrb[0].mxu0 %v360
    %v463 = vpop.f32.mrb[0].mxu0
    %v464 = vadd.f32 0.0, %v463
    %v465 = vpop.f32.mrb[0].mxu0
    %466 = vdwg.mxu0
    %v467 = vld [vmem:[#allocation3] sm:$0xff]
    %v468 = vld [vmem:[#allocation3 + $0x8] sm:$0xff]
    %v469 = vld [vmem:[#allocation3 + $0x10] sm:$0xff]
    %v470 = vld [vmem:[#allocation3 + $0x18] sm:$0xff]
    %v471 = vld [vmem:[#allocation3 + $0x20] sm:$0xff]
    %v472 = vld [vmem:[#allocation3 + $0x28] sm:$0xff]
    %v473 = vld [vmem:[#allocation3 + $0x30] sm:$0xff]
    %v474 = vld [vmem:[#allocation9] sm:$0xff]
    %v475 = vld [vmem:[#allocation9 + $0x8] sm:$0xff]
    %v476 = vld [vmem:[#allocation9 + $0x10] sm:$0xff]
    %v477 = vld [vmem:[#allocation9 + $0x18] sm:$0xff]
    %v478 = vld [vmem:[%s6] sm:$0x1]
    %v480 = vlaneseq
    %v481 = vshrl.u32 %v480, 7
    %v482 = vsub.s32 0, %v481
    %v483 = vrot.slane %v478, %v482
    %v486 = vsel %vm234, %v467, 0
    %v489 = vsel %vm234, %v468, 0
    %v492 = vsel %vm234, %v469, 0
    %v495 = vsel %vm234, %v470, 0
    %v498 = vsel %vm234, %v471, 0
    %v501 = vsel %vm234, %v472, 0
    %v504 = vsel %vm234, %v473, 0
    %506 = vmatprep.subr.mxu0 0.0
    %507 = vmatpush1.msra.mxu0 %v474
    %508 = vmatprep.subr.mxu0 0.0
    %509 = vmatpush1.msra.mxu0 %v475
    %510 = vmatprep.subr.mxu0 0.0
    %511 = vmatpush1.msra.mxu0 %v476
    %512 = vmatprep.subr.mxu0 0.0
    %513 = vmatpush1.msra.mxu0 %v477
    %514 = vmatprep.subr.mxu0 0.0
    %515 = vmatpush1.msra.mxu0 0.0
    %516 = vmatprep.subr.mxu0 0.0
    %517 = vmatpush1.msra.mxu0 0.0
    %518 = vmatprep.subr.mxu0 0.0
    %519 = vmatpush1.msra.mxu0 0.0
    %520 = vmatprep.subr.mxu0 0.0
    %521 = vmatpush1.msra.mxu0 0.0
    %522 = vmatprep.subr.mxu0 0.0
    %523 = vmatpush1.msra.mxu0 0.0
    %524 = vmatprep.subr.mxu0 0.0
    %525 = vmatpush1.msra.mxu0 0.0
    %526 = vmatprep.subr.mxu0 0.0
    %527 = vmatpush1.msra.mxu0 0.0
    %528 = vmatprep.subr.mxu0 0.0
    %529 = vmatpush1.msra.mxu0 0.0
    %530 = vmatprep.subr.mxu0 0.0
    %531 = vmatpush1.msra.mxu0 0.0
    %532 = vmatprep.subr.mxu0 0.0
    %533 = vmatpush1.msra.mxu0 0.0
    %534 = vmatprep.subr.mxu0 0.0
    %535 = vmatpush1.msra.mxu0 0.0
    %536 = vmatprep.subr.mxu0 0.0
    %537 = vmatpush1.msra.mxu0 0.0
    %538 = vmatprep.subr.mxu0 0.0
    %539 = vmatpush1.msra.mxu0 0.0
    %540 = vmatprep.subr.mxu0 0.0
    %541 = vmatpush1.msra.mxu0 0.0
    %542 = vmatprep.subr.mxu0 0.0
    %543 = vmatpush1.msra.mxu0 0.0
    %544 = vmatprep.subr.mxu0 0.0
    %545 = vmatpush1.msra.mxu0 0.0
    %546 = vmatprep.subr.mxu0 0.0
    %547 = vmatpush1.msra.mxu0 0.0
    %548 = vmatprep.subr.mxu0 0.0
    %549 = vmatpush1.msra.mxu0 0.0
    %550 = vmatprep.subr.mxu0 0.0
    %551 = vmatpush1.msra.mxu0 0.0
    %552 = vmatprep.subr.mxu0 0.0
    %553 = vmatpush1.msra.mxu0 0.0
    %554 = vmatprep.subr.mxu0 0.0
    %555 = vmatpush1.msra.mxu0 0.0
    %556 = vmatprep.subr.mxu0 0.0
    %557 = vmatpush1.msra.mxu0 0.0
    %558 = vmatprep.subr.mxu0 0.0
    %559 = vmatpush1.msra.mxu0 0.0
    %560 = vmatprep.subr.mxu0 0.0
    %561 = vmatpush1.msra.mxu0 0.0
    %562 = vmatprep.subr.mxu0 0.0
    %563 = vmatpush1.msra.mxu0 0.0
    %564 = vmatprep.subr.mxu0 0.0
    %565 = vmatpush1.msra.mxu0 0.0
    %566 = vmatprep.subr.mxu0 0.0
    %567 = vmatpush1.msra.mxu0 0.0
    %568 = vmatprep.subr.mxu0 0.0
    %569 = vmatpush1.msra.mxu0 0.0
    %570 = vmatprep.mubr.f32.mxu0 0.0
    %571 = vmatmul.mubr.f32.gmra.mrb[0].mxu0 %v486
    %v572 = vpop.f32.mrb[0].mxu0
    %v573 = vadd.f32 %v483, %v572
    %v574 = vpop.f32.mrb[0].mxu0
    %575 = vmatprep.mubr.f32.mxu0 0.0
    %576 = vmatmul.mubr.f32.gmra.mrb[0].mxu0 %v489
    %v577 = vpop.f32.mrb[0].mxu0
    %v578 = vadd.f32 %v483, %v577
    %v579 = vpop.f32.mrb[0].mxu0
    %580 = vmatprep.mubr.f32.mxu0 0.0
    %581 = vmatmul.mubr.f32.gmra.mrb[0].mxu0 %v492
    %v582 = vpop.f32.mrb[0].mxu0
    %v583 = vadd.f32 %v483, %v582
    %v584 = vpop.f32.mrb[0].mxu0
    %585 = vmatprep.mubr.f32.mxu0 0.0
    %586 = vmatmul.mubr.f32.gmra.mrb[0].mxu0 %v495
    %v587 = vpop.f32.mrb[0].mxu0
    %v588 = vadd.f32 %v483, %v587
    %v589 = vpop.f32.mrb[0].mxu0
    %590 = vmatprep.mubr.f32.mxu0 0.0
    %591 = vmatmul.mubr.f32.gmra.mrb[0].mxu0 %v498
    %v592 = vpop.f32.mrb[0].mxu0
    %v593 = vadd.f32 %v483, %v592
    %v594 = vpop.f32.mrb[0].mxu0
    %595 = vmatprep.mubr.f32.mxu0 0.0
    %596 = vmatmul.mubr.f32.gmra.mrb[0].mxu0 %v501
    %v597 = vpop.f32.mrb[0].mxu0
    %v598 = vadd.f32 %v483, %v597
    %v599 = vpop.f32.mrb[0].mxu0
    %600 = vmatprep.mubr.f32.mxu0 0.0
    %601 = vmatmul.mubr.f32.gmra.mrb[0].mxu0 %v504
    %v602 = vpop.f32.mrb[0].mxu0
    %v603 = vadd.f32 %v483, %v602
    %v604 = vpop.f32.mrb[0].mxu0
    %605 = vdwg.mxu0
    %vm606 = vcmask 785408
    %607 = vst.msk [vmem:[#allocation2] sm:$0xff] %vm606, %v573
    %608 = vst.msk [vmem:[#allocation2 + $0x8] sm:$0xff] %vm606, %v578
    %609 = vst.msk [vmem:[#allocation2 + $0x10] sm:$0xff] %vm606, %v583
    %610 = vst.msk [vmem:[#allocation2 + $0x18] sm:$0xff] %vm606, %v588
    %611 = vst.msk [vmem:[#allocation2 + $0x20] sm:$0xff] %vm606, %v593
    %612 = vst.msk [vmem:[#allocation2 + $0x28] sm:$0xff] %vm606, %v598
    %613 = vst.msk [vmem:[#allocation2 + $0x30] sm:$0xff] %vm606, %v603
    loop: start=0, step=1, limit=7
    $region114: #{tpu_custom_call.1} parent=1 // loop_pre_header
      _
    $region115: #{tpu_custom_call.1} parent=1 // loop_header
      %s615 = sphi 0, %s619
      %p616 = scmp.ge.s32.totalorder %s615, 7
      %v620 = vphi %v333, %v1347
    $region116: #{tpu_custom_call.1} parent=1 // loop_header_branch
      %618 = sbr.rel (%p616) target = $region120
    $region117: #{tpu_custom_call.1} parent=1 // loop_body
      %s621 = smul.u32 %s615, 8
      %s622 = scalar_lea.vmem [#allocation2], %s621
      %v623 = vld [vmem:[%s622] sm:$0xff]
      %v625 = vsel %vm234, %v620, 0
      %627 = vmatprep.subr.mxu0 0.0
      %628 = vmatpush1.msra.mxu0 %v202
      %629 = vmatprep.subr.mxu0 0.0
      %630 = vmatpush1.msra.mxu0 %v203
      %631 = vmatprep.subr.mxu0 0.0
      %632 = vmatpush1.msra.mxu0 %v204
      %633 = vmatprep.subr.mxu0 0.0
      %634 = vmatpush1.msra.mxu0 %v205
      %635 = vmatprep.subr.mxu0 0.0
      %636 = vmatpush1.msra.mxu0 0.0
      %637 = vmatprep.subr.mxu0 0.0
      %638 = vmatpush1.msra.mxu0 0.0
      %639 = vmatprep.subr.mxu0 0.0
      %640 = vmatpush1.msra.mxu0 0.0
      %641 = vmatprep.subr.mxu0 0.0
      %642 = vmatpush1.msra.mxu0 0.0
      %643 = vmatprep.subr.mxu0 0.0
      %644 = vmatpush1.msra.mxu0 0.0
      %645 = vmatprep.subr.mxu0 0.0
      %646 = vmatpush1.msra.mxu0 0.0
      %647 = vmatprep.subr.mxu0 0.0
      %648 = vmatpush1.msra.mxu0 0.0
      %649 = vmatprep.subr.mxu0 0.0
      %650 = vmatpush1.msra.mxu0 0.0
      %651 = vmatprep.subr.mxu0 0.0
      %652 = vmatpush1.msra.mxu0 0.0
      %653 = vmatprep.subr.mxu0 0.0
      %654 = vmatpush1.msra.mxu0 0.0
      %655 = vmatprep.subr.mxu0 0.0
      %656 = vmatpush1.msra.mxu0 0.0
      %657 = vmatprep.subr.mxu0 0.0
      %658 = vmatpush1.msra.mxu0 0.0
      %659 = vmatprep.subr.mxu0 0.0
      %660 = vmatpush1.msra.mxu0 0.0
      %661 = vmatprep.subr.mxu0 0.0
      %662 = vmatpush1.msra.mxu0 0.0
      %663 = vmatprep.subr.mxu0 0.0
      %664 = vmatpush1.msra.mxu0 0.0
      %665 = vmatprep.subr.mxu0 0.0
      %666 = vmatpush1.msra.mxu0 0.0
      %667 = vmatprep.subr.mxu0 0.0
      %668 = vmatpush1.msra.mxu0 0.0
      %669 = vmatprep.subr.mxu0 0.0
      %670 = vmatpush1.msra.mxu0 0.0
      %671 = vmatprep.subr.mxu0 0.0
      %672 = vmatpush1.msra.mxu0 0.0
      %673 = vmatprep.subr.mxu0 0.0
      %674 = vmatpush1.msra.mxu0 0.0
      %675 = vmatprep.subr.mxu0 0.0
      %676 = vmatpush1.msra.mxu0 0.0
      %677 = vmatprep.subr.mxu0 0.0
      %678 = vmatpush1.msra.mxu0 0.0
      %679 = vmatprep.subr.mxu0 0.0
      %680 = vmatpush1.msra.mxu0 0.0
      %681 = vmatprep.subr.mxu0 0.0
      %682 = vmatpush1.msra.mxu0 0.0
      %683 = vmatprep.subr.mxu0 0.0
      %684 = vmatpush1.msra.mxu0 0.0
      %685 = vmatprep.subr.mxu0 0.0
      %686 = vmatpush1.msra.mxu0 0.0
      %687 = vmatprep.subr.mxu0 0.0
      %688 = vmatpush1.msra.mxu0 0.0
      %689 = vmatprep.subr.mxu0 0.0
      %690 = vmatpush1.msra.mxu0 0.0
      %691 = vmatprep.mubr.f32.mxu0 0.0
      %692 = vmatmul.mubr.f32.gmra.mrb[0].mxu0 %v625
      %v693 = vpop.f32.mrb[0].mxu0
      %v694 = vadd.f32 0.0, %v693
      %v695 = vpop.f32.mrb[0].mxu0
      %696 = vdwg.mxu0
      %v697 = vadd.f32 %v623, %v694
      %v698 = vxor.u32 %v697, 2147483648
      %v699 = vmul.f32 %v698, 1.442695
      %v700 = vpow.pop %v699
      %v701 = vadd.f32 %v700, 1.0
      %v702 = vrcp.pop %v701
      %v703 = vmul.f32 1.0, %v702
      %v705 = vlaneseq
      %v706 = vshrl.u32 %v705, 7
      %v707 = vsub.s32 0, %v706
      %v708 = vrot.slane %v206, %v707
      %709 = vrot.lane.b32.xlu0 %v708, 64
      %v710 = vpop.permute.xlu0 %709
      %v712 = vadd.f32 %v694, %v710
      %714 = vrot.lane.b32.xlu0 %v712, 64
      %v715 = vpop.permute.xlu0 %714
      %v717 = vmul.f32 %v703, %v715
      %719 = vrot.lane.b32.xlu0 %v717, 64
      %v720 = vpop.permute.xlu0 %719
      %v722 = vadd.f32 %v623, %v720
      %v723 = vtanh.pop %v722
      %v724 = vsub.f32 1.0, %v703
      %726 = vrot.lane.b32.xlu0 %v723, 96
      %v727 = vpop.permute.xlu0 %726
      %v729 = vmul.f32 %v724, %v727
      %730 = vrot.lane.b32.xlu0 %v620, 32
      %v731 = vpop.permute.xlu0 %730
      %v733 = vmul.f32 %v703, %v731
      %v734 = vadd.f32 %v729, %v733
      %736 = vrot.lane.b32.xlu0 %v734, 96
      %v737 = vpop.permute.xlu0 %736
      %v738 = vsel %vm234, %v737, 0
      %740 = vmatprep.subr.mxu0 0.0
      %741 = vmatpush1.msra.mxu0 %v217
      %742 = vmatprep.subr.mxu0 0.0
      %743 = vmatpush1.msra.mxu0 %v218
      %744 = vmatprep.subr.mxu0 0.0
      %745 = vmatpush1.msra.mxu0 %v219
      %746 = vmatprep.subr.mxu0 0.0
      %747 = vmatpush1.msra.mxu0 %v220
      %748 = vmatprep.subr.mxu0 0.0
      %749 = vmatpush1.msra.mxu0 0.0
      %750 = vmatprep.subr.mxu0 0.0
      %751 = vmatpush1.msra.mxu0 0.0
      %752 = vmatprep.subr.mxu0 0.0
      %753 = vmatpush1.msra.mxu0 0.0
      %754 = vmatprep.subr.mxu0 0.0
      %755 = vmatpush1.msra.mxu0 0.0
      %756 = vmatprep.subr.mxu0 0.0
      %757 = vmatpush1.msra.mxu0 0.0
      %758 = vmatprep.subr.mxu0 0.0
      %759 = vmatpush1.msra.mxu0 0.0
      %760 = vmatprep.subr.mxu0 0.0
      %761 = vmatpush1.msra.mxu0 0.0
      %762 = vmatprep.subr.mxu0 0.0
      %763 = vmatpush1.msra.mxu0 0.0
      %764 = vmatprep.subr.mxu0 0.0
      %765 = vmatpush1.msra.mxu0 0.0
      %766 = vmatprep.subr.mxu0 0.0
      %767 = vmatpush1.msra.mxu0 0.0
      %768 = vmatprep.subr.mxu0 0.0
      %769 = vmatpush1.msra.mxu0 0.0
      %770 = vmatprep.subr.mxu0 0.0
      %771 = vmatpush1.msra.mxu0 0.0
      %772 = vmatprep.subr.mxu0 0.0
      %773 = vmatpush1.msra.mxu0 0.0
      %774 = vmatprep.subr.mxu0 0.0
      %775 = vmatpush1.msra.mxu0 0.0
      %776 = vmatprep.subr.mxu0 0.0
      %777 = vmatpush1.msra.mxu0 0.0
      %778 = vmatprep.subr.mxu0 0.0
      %779 = vmatpush1.msra.mxu0 0.0
      %780 = vmatprep.subr.mxu0 0.0
      %781 = vmatpush1.msra.mxu0 0.0
      %782 = vmatprep.subr.mxu0 0.0
      %783 = vmatpush1.msra.mxu0 0.0
      %784 = vmatprep.subr.mxu0 0.0
      %785 = vmatpush1.msra.mxu0 0.0
      %786 = vmatprep.subr.mxu0 0.0
      %787 = vmatpush1.msra.mxu0 0.0
      %788 = vmatprep.subr.mxu0 0.0
      %789 = vmatpush1.msra.mxu0 0.0
      %790 = vmatprep.subr.mxu0 0.0
      %791 = vmatpush1.msra.mxu0 0.0
      %792 = vmatprep.subr.mxu0 0.0
      %793 = vmatpush1.msra.mxu0 0.0
      %794 = vmatprep.subr.mxu0 0.0
      %795 = vmatpush1.msra.mxu0 0.0
      %796 = vmatprep.subr.mxu0 0.0
      %797 = vmatpush1.msra.mxu0 0.0
      %798 = vmatprep.subr.mxu0 0.0
      %799 = vmatpush1.msra.mxu0 0.0
      %800 = vmatprep.subr.mxu0 0.0
      %801 = vmatpush1.msra.mxu0 0.0
      %802 = vmatprep.subr.mxu0 0.0
      %803 = vmatpush1.msra.mxu0 0.0
      %804 = vmatprep.mubr.f32.mxu0 0.0
      %805 = vmatmul.mubr.f32.gmra.mrb[0].mxu0 %v738
      %v806 = vpop.f32.mrb[0].mxu0
      %v807 = vadd.f32 0.0, %v806
      %v808 = vpop.f32.mrb[0].mxu0
      %809 = vdwg.mxu0
      %v810 = vadd.f32 %v429, %v807
      %v811 = vadd.f32 %v434, %v807
      %v812 = vadd.f32 %v439, %v807
      %v813 = vadd.f32 %v444, %v807
      %v814 = vadd.f32 %v449, %v807
      %v815 = vadd.f32 %v454, %v807
      %v816 = vadd.f32 %v459, %v807
      %v817 = vadd.f32 %v464, %v807
      %v818 = vtanh.pop %v810
      %v819 = vtanh.pop %v811
      %v820 = vtanh.pop %v812
      %v821 = vtanh.pop %v813
      %v822 = vtanh.pop %v814
      %v823 = vtanh.pop %v815
      %v824 = vtanh.pop %v816
      %v825 = vtanh.pop %v817
      %v827 = vsel %vm234, %v818, 0
      %v830 = vsel %vm234, %v819, 0
      %v833 = vsel %vm234, %v820, 0
      %v836 = vsel %vm234, %v821, 0
      %v839 = vsel %vm234, %v822, 0
      %v842 = vsel %vm234, %v823, 0
      %v845 = vsel %vm234, %v824, 0
      %v848 = vsel %vm234, %v825, 0
      %850 = vmatprep.subr.mxu0 0.0
      %851 = vmatpush1.msra.mxu0 %v221
      %852 = vmatprep.subr.mxu0 0.0
      %853 = vmatpush1.msra.mxu0 %v222
      %854 = vmatprep.subr.mxu0 0.0
      %855 = vmatpush1.msra.mxu0 %v223
      %856 = vmatprep.subr.mxu0 0.0
      %857 = vmatpush1.msra.mxu0 %v224
      %858 = vmatprep.subr.mxu0 0.0
      %859 = vmatpush1.msra.mxu0 0.0
      %860 = vmatprep.subr.mxu0 0.0
      %861 = vmatpush1.msra.mxu0 0.0
      %862 = vmatprep.subr.mxu0 0.0
      %863 = vmatpush1.msra.mxu0 0.0
      %864 = vmatprep.subr.mxu0 0.0
      %865 = vmatpush1.msra.mxu0 0.0
      %866 = vmatprep.subr.mxu0 0.0
      %867 = vmatpush1.msra.mxu0 0.0
      %868 = vmatprep.subr.mxu0 0.0
      %869 = vmatpush1.msra.mxu0 0.0
      %870 = vmatprep.subr.mxu0 0.0
      %871 = vmatpush1.msra.mxu0 0.0
      %872 = vmatprep.subr.mxu0 0.0
      %873 = vmatpush1.msra.mxu0 0.0
      %874 = vmatprep.subr.mxu0 0.0
      %875 = vmatpush1.msra.mxu0 0.0
      %876 = vmatprep.subr.mxu0 0.0
      %877 = vmatpush1.msra.mxu0 0.0
      %878 = vmatprep.subr.mxu0 0.0
      %879 = vmatpush1.msra.mxu0 0.0
      %880 = vmatprep.subr.mxu0 0.0
      %881 = vmatpush1.msra.mxu0 0.0
      %882 = vmatprep.subr.mxu0 0.0
      %883 = vmatpush1.msra.mxu0 0.0
      %884 = vmatprep.subr.mxu0 0.0
      %885 = vmatpush1.msra.mxu0 0.0
      %886 = vmatprep.subr.mxu0 0.0
      %887 = vmatpush1.msra.mxu0 0.0
      %888 = vmatprep.subr.mxu0 0.0
      %889 = vmatpush1.msra.mxu0 0.0
      %890 = vmatprep.subr.mxu0 0.0
      %891 = vmatpush1.msra.mxu0 0.0
      %892 = vmatprep.subr.mxu0 0.0
      %893 = vmatpush1.msra.mxu0 0.0
      %894 = vmatprep.subr.mxu0 0.0
      %895 = vmatpush1.msra.mxu0 0.0
      %896 = vmatprep.subr.mxu0 0.0
      %897 = vmatpush1.msra.mxu0 0.0
      %898 = vmatprep.subr.mxu0 0.0
      %899 = vmatpush1.msra.mxu0 0.0
      %900 = vmatprep.subr.mxu0 0.0
      %901 = vmatpush1.msra.mxu0 0.0
      %902 = vmatprep.subr.mxu0 0.0
      %903 = vmatpush1.msra.mxu0 0.0
      %904 = vmatprep.subr.mxu0 0.0
      %905 = vmatpush1.msra.mxu0 0.0
      %906 = vmatprep.subr.mxu0 0.0
      %907 = vmatpush1.msra.mxu0 0.0
      %908 = vmatprep.subr.mxu0 0.0
      %909 = vmatpush1.msra.mxu0 0.0
      %910 = vmatprep.subr.mxu0 0.0
      %911 = vmatpush1.msra.mxu0 0.0
      %912 = vmatprep.subr.mxu0 0.0
      %913 = vmatpush1.msra.mxu0 0.0
      %914 = vmatprep.mubr.f32.mxu0 0.0
      %915 = vmatmul.mubr.f32.gmra.mrb[0].mxu0 %v827
      %v916 = vpop.f32.mrb[0].mxu0
      %v917 = vadd.f32 0.0, %v916
      %v918 = vpop.f32.mrb[0].mxu0
      %919 = vmatprep.mubr.f32.mxu0 0.0
      %920 = vmatmul.mubr.f32.gmra.mrb[0].mxu0 %v830
      %v921 = vpop.f32.mrb[0].mxu0
      %v922 = vadd.f32 0.0, %v921
      %v923 = vpop.f32.mrb[0].mxu0
      %924 = vmatprep.mubr.f32.mxu0 0.0
      %925 = vmatmul.mubr.f32.gmra.mrb[0].mxu0 %v833
      %v926 = vpop.f32.mrb[0].mxu0
      %v927 = vadd.f32 0.0, %v926
      %v928 = vpop.f32.mrb[0].mxu0
      %929 = vmatprep.mubr.f32.mxu0 0.0
      %930 = vmatmul.mubr.f32.gmra.mrb[0].mxu0 %v836
      %v931 = vpop.f32.mrb[0].mxu0
      %v932 = vadd.f32 0.0, %v931
      %v933 = vpop.f32.mrb[0].mxu0
      %934 = vmatprep.mubr.f32.mxu0 0.0
      %935 = vmatmul.mubr.f32.gmra.mrb[0].mxu0 %v839
      %v936 = vpop.f32.mrb[0].mxu0
      %v937 = vadd.f32 0.0, %v936
      %v938 = vpop.f32.mrb[0].mxu0
      %939 = vmatprep.mubr.f32.mxu0 0.0
      %940 = vmatmul.mubr.f32.gmra.mrb[0].mxu0 %v842
      %v941 = vpop.f32.mrb[0].mxu0
      %v942 = vadd.f32 0.0, %v941
      %v943 = vpop.f32.mrb[0].mxu0
      %944 = vmatprep.mubr.f32.mxu0 0.0
      %945 = vmatmul.mubr.f32.gmra.mrb[0].mxu0 %v845
      %v946 = vpop.f32.mrb[0].mxu0
      %v947 = vadd.f32 0.0, %v946
      %v948 = vpop.f32.mrb[0].mxu0
      %949 = vmatprep.mubr.f32.mxu0 0.0
      %950 = vmatmul.mubr.f32.gmra.mrb[0].mxu0 %v848
      %v951 = vpop.f32.mrb[0].mxu0
      %v952 = vadd.f32 0.0, %v951
      %v953 = vpop.f32.mrb[0].mxu0
      %954 = vdwg.mxu0
      %vm955 = vcmask 7168
      %v956 = vsel %vm955, %v917, -inf
      %v957 = vsel %vm955, %v922, -inf
      %v958 = vsel %vm955, %v927, -inf
      %v959 = vsel %vm955, %v932, -inf
      %v960 = vsel %vm955, %v937, -inf
      %v961 = vmax.f32 %v956, %v960
      %v962 = vsel %vm955, %v942, -inf
      %v963 = vmax.f32 %v957, %v962
      %v964 = vsel %vm955, %v947, -inf
      %v965 = vmax.f32 %v958, %v964
      %v966 = vsel %vm955, %v952, -inf
      %v967 = vmax.f32 %v959, %v966
      %v968 = vmax.f32 %v961, %v963
      %v969 = vmax.f32 %v965, %v967
      %v970 = vmax.f32 %v968, %v969
      %v971 = vsub.f32 %v917, %v970
      %v972 = vsub.f32 %v922, %v970
      %v973 = vsub.f32 %v927, %v970
      %v974 = vsub.f32 %v932, %v970
      %v975 = vsub.f32 %v937, %v970
      %v976 = vsub.f32 %v942, %v970
      %v977 = vsub.f32 %v947, %v970
      %v978 = vsub.f32 %v952, %v970
      %v979 = vmul.f32 %v971, 1.442695
      %v980 = vpow.pop %v979
      %v981 = vmul.f32 %v972, 1.442695
      %v982 = vpow.pop %v981
      %v983 = vmul.f32 %v973, 1.442695
      %v984 = vpow.pop %v983
      %v985 = vmul.f32 %v974, 1.442695
      %v986 = vpow.pop %v985
      %v987 = vmul.f32 %v975, 1.442695
      %v988 = vpow.pop %v987
      %v989 = vmul.f32 %v976, 1.442695
      %v990 = vpow.pop %v989
      %v991 = vmul.f32 %v977, 1.442695
      %v992 = vpow.pop %v991
      %v993 = vmul.f32 %v978, 1.442695
      %v994 = vpow.pop %v993
      %v995 = vsel %vm955, %v980, 0.0
      %v996 = vsel %vm955, %v982, 0.0
      %v997 = vadd.f32 %v995, %v996
      %v998 = vsel %vm955, %v984, 0.0
      %v999 = vadd.f32 %v997, %v998
      %v1000 = vsel %vm955, %v986, 0.0
      %v1001 = vadd.f32 %v999, %v1000
      %v1002 = vsel %vm955, %v988, 0.0
      %v1003 = vadd.f32 %v1001, %v1002
      %v1004 = vsel %vm955, %v990, 0.0
      %v1005 = vadd.f32 %v1003, %v1004
      %v1006 = vsel %vm955, %v992, 0.0
      %v1007 = vadd.f32 %v1005, %v1006
      %v1008 = vsel %vm955, %v994, 0.0
      %v1009 = vadd.f32 %v1007, %v1008
      %v1010 = vrcp.pop %v1009
      %v1011 = vmul.f32 %v980, %v1010
      %v1012 = vmul.f32 %v982, %v1010
      %v1013 = vmul.f32 %v984, %v1010
      %v1014 = vmul.f32 %v986, %v1010
      %v1015 = vmul.f32 %v988, %v1010
      %v1016 = vmul.f32 %v990, %v1010
      %v1017 = vmul.f32 %v992, %v1010
      %v1018 = vmul.f32 %v994, %v1010
      %1020 = vset.pattern.permute.xlu0 0
      %1021 = vperm.xlu0 %1020, %v1011
      %v1022 = vpop.permute.xlu0 %1021
      %1025 = vset.pattern.permute.xlu0 0
      %1026 = vperm.xlu0 %1025, %v1012
      %v1027 = vpop.permute.xlu0 %1026
      %1030 = vset.pattern.permute.xlu0 0
      %1031 = vperm.xlu0 %1030, %v1013
      %v1032 = vpop.permute.xlu0 %1031
      %1035 = vset.pattern.permute.xlu0 0
      %1036 = vperm.xlu0 %1035, %v1014
      %v1037 = vpop.permute.xlu0 %1036
      %1040 = vset.pattern.permute.xlu0 0
      %1041 = vperm.xlu0 %1040, %v1015
      %v1042 = vpop.permute.xlu0 %1041
      %1045 = vset.pattern.permute.xlu0 0
      %1046 = vperm.xlu0 %1045, %v1016
      %v1047 = vpop.permute.xlu0 %1046
      %1050 = vset.pattern.permute.xlu0 0
      %1051 = vperm.xlu0 %1050, %v1017
      %v1052 = vpop.permute.xlu0 %1051
      %1055 = vset.pattern.permute.xlu0 0
      %1056 = vperm.xlu0 %1055, %v1018
      %v1057 = vpop.permute.xlu0 %1056
      %v1059 = vmul.f32 %v1022, %v194
      %v1060 = vmul.f32 %v1027, %v195
      %v1061 = vmul.f32 %v1032, %v196
      %v1062 = vmul.f32 %v1037, %v197
      %v1063 = vmul.f32 %v1042, %v198
      %v1064 = vmul.f32 %v1047, %v199
      %v1065 = vmul.f32 %v1052, %v200
      %v1066 = vmul.f32 %v1057, %v201
      %v1067 = vsel %vm234, %v1059, 0.0
      %v1068 = vsel %vm234, %v1060, 0.0
      %v1069 = vadd.f32 %v1067, %v1068
      %v1070 = vsel %vm234, %v1061, 0.0
      %v1071 = vadd.f32 %v1069, %v1070
      %v1072 = vsel %vm234, %v1062, 0.0
      %v1073 = vadd.f32 %v1071, %v1072
      %v1074 = vsel %vm234, %v1063, 0.0
      %v1075 = vadd.f32 %v1073, %v1074
      %v1076 = vsel %vm234, %v1064, 0.0
      %v1077 = vadd.f32 %v1075, %v1076
      %v1078 = vsel %vm234, %v1065, 0.0
      %v1079 = vadd.f32 %v1077, %v1078
      %v1080 = vsel %vm234, %v1066, 0.0
      %v1081 = vadd.f32 %v1079, %v1080
      %v1083 = vsel %vm234, %v1081, 0
      %1085 = vmatprep.subr.mxu0 0.0
      %1086 = vmatpush1.msra.mxu0 %v225
      %1087 = vmatprep.subr.mxu0 0.0
      %1088 = vmatpush1.msra.mxu0 %v226
      %1089 = vmatprep.subr.mxu0 0.0
      %1090 = vmatpush1.msra.mxu0 %v227
      %1091 = vmatprep.subr.mxu0 0.0
      %1092 = vmatpush1.msra.mxu0 %v228
      %1093 = vmatprep.subr.mxu0 0.0
      %1094 = vmatpush1.msra.mxu0 0.0
      %1095 = vmatprep.subr.mxu0 0.0
      %1096 = vmatpush1.msra.mxu0 0.0
      %1097 = vmatprep.subr.mxu0 0.0
      %1098 = vmatpush1.msra.mxu0 0.0
      %1099 = vmatprep.subr.mxu0 0.0
      %1100 = vmatpush1.msra.mxu0 0.0
      %1101 = vmatprep.subr.mxu0 0.0
      %1102 = vmatpush1.msra.mxu0 0.0
      %1103 = vmatprep.subr.mxu0 0.0
      %1104 = vmatpush1.msra.mxu0 0.0
      %1105 = vmatprep.subr.mxu0 0.0
      %1106 = vmatpush1.msra.mxu0 0.0
      %1107 = vmatprep.subr.mxu0 0.0
      %1108 = vmatpush1.msra.mxu0 0.0
      %1109 = vmatprep.subr.mxu0 0.0
      %1110 = vmatpush1.msra.mxu0 0.0
      %1111 = vmatprep.subr.mxu0 0.0
      %1112 = vmatpush1.msra.mxu0 0.0
      %1113 = vmatprep.subr.mxu0 0.0
      %1114 = vmatpush1.msra.mxu0 0.0
      %1115 = vmatprep.subr.mxu0 0.0
      %1116 = vmatpush1.msra.mxu0 0.0
      %1117 = vmatprep.subr.mxu0 0.0
      %1118 = vmatpush1.msra.mxu0 0.0
      %1119 = vmatprep.subr.mxu0 0.0
      %1120 = vmatpush1.msra.mxu0 0.0
      %1121 = vmatprep.subr.mxu0 0.0
      %1122 = vmatpush1.msra.mxu0 0.0
      %1123 = vmatprep.subr.mxu0 0.0
      %1124 = vmatpush1.msra.mxu0 0.0
      %1125 = vmatprep.subr.mxu0 0.0
      %1126 = vmatpush1.msra.mxu0 0.0
      %1127 = vmatprep.subr.mxu0 0.0
      %1128 = vmatpush1.msra.mxu0 0.0
      %1129 = vmatprep.subr.mxu0 0.0
      %1130 = vmatpush1.msra.mxu0 0.0
      %1131 = vmatprep.subr.mxu0 0.0
      %1132 = vmatpush1.msra.mxu0 0.0
      %1133 = vmatprep.subr.mxu0 0.0
      %1134 = vmatpush1.msra.mxu0 0.0
      %1135 = vmatprep.subr.mxu0 0.0
      %1136 = vmatpush1.msra.mxu0 0.0
      %1137 = vmatprep.subr.mxu0 0.0
      %1138 = vmatpush1.msra.mxu0 0.0
      %1139 = vmatprep.subr.mxu0 0.0
      %1140 = vmatpush1.msra.mxu0 0.0
      %1141 = vmatprep.subr.mxu0 0.0
      %1142 = vmatpush1.msra.mxu0 0.0
      %1143 = vmatprep.subr.mxu0 0.0
      %1144 = vmatpush1.msra.mxu0 0.0
      %1145 = vmatprep.subr.mxu0 0.0
      %1146 = vmatpush1.msra.mxu0 0.0
      %1147 = vmatprep.subr.mxu0 0.0
      %1148 = vmatpush1.msra.mxu0 0.0
      %1149 = vmatprep.mubr.f32.mxu0 0.0
      %1150 = vmatmul.mubr.f32.gmra.mrb[0].mxu0 %v1083
      %v1151 = vpop.f32.mrb[0].mxu0
      %v1152 = vadd.f32 0.0, %v1151
      %v1153 = vpop.f32.mrb[0].mxu0
      %1154 = vdwg.mxu0
      %v1156 = vlaneseq
      %v1157 = vshrl.u32 %v1156, 7
      %v1158 = vsub.s32 0, %v1157
      %v1159 = vrot.slane %v215, %v1158
      %v1162 = vsel %vm234, %v1152, 0
      %1164 = vmatprep.subr.mxu0 0.0
      %1165 = vmatpush1.msra.mxu0 %v207
      %1166 = vmatprep.subr.mxu0 0.0
      %1167 = vmatpush1.msra.mxu0 %v208
      %1168 = vmatprep.subr.mxu0 0.0
      %1169 = vmatpush1.msra.mxu0 %v209
      %1170 = vmatprep.subr.mxu0 0.0
      %1171 = vmatpush1.msra.mxu0 %v210
      %1172 = vmatprep.subr.mxu0 0.0
      %1173 = vmatpush1.msra.mxu0 0.0
      %1174 = vmatprep.subr.mxu0 0.0
      %1175 = vmatpush1.msra.mxu0 0.0
      %1176 = vmatprep.subr.mxu0 0.0
      %1177 = vmatpush1.msra.mxu0 0.0
      %1178 = vmatprep.subr.mxu0 0.0
      %1179 = vmatpush1.msra.mxu0 0.0
      %1180 = vmatprep.subr.mxu0 0.0
      %1181 = vmatpush1.msra.mxu0 0.0
      %1182 = vmatprep.subr.mxu0 0.0
      %1183 = vmatpush1.msra.mxu0 0.0
      %1184 = vmatprep.subr.mxu0 0.0
      %1185 = vmatpush1.msra.mxu0 0.0
      %1186 = vmatprep.subr.mxu0 0.0
      %1187 = vmatpush1.msra.mxu0 0.0
      %1188 = vmatprep.subr.mxu0 0.0
      %1189 = vmatpush1.msra.mxu0 0.0
      %1190 = vmatprep.subr.mxu0 0.0
      %1191 = vmatpush1.msra.mxu0 0.0
      %1192 = vmatprep.subr.mxu0 0.0
      %1193 = vmatpush1.msra.mxu0 0.0
      %1194 = vmatprep.subr.mxu0 0.0
      %1195 = vmatpush1.msra.mxu0 0.0
      %1196 = vmatprep.subr.mxu0 0.0
      %1197 = vmatpush1.msra.mxu0 0.0
      %1198 = vmatprep.subr.mxu0 0.0
      %1199 = vmatpush1.msra.mxu0 0.0
      %1200 = vmatprep.subr.mxu0 0.0
      %1201 = vmatpush1.msra.mxu0 0.0
      %1202 = vmatprep.subr.mxu0 0.0
      %1203 = vmatpush1.msra.mxu0 0.0
      %1204 = vmatprep.subr.mxu0 0.0
      %1205 = vmatpush1.msra.mxu0 0.0
      %1206 = vmatprep.subr.mxu0 0.0
      %1207 = vmatpush1.msra.mxu0 0.0
      %1208 = vmatprep.subr.mxu0 0.0
      %1209 = vmatpush1.msra.mxu0 0.0
      %1210 = vmatprep.subr.mxu0 0.0
      %1211 = vmatpush1.msra.mxu0 0.0
      %1212 = vmatprep.subr.mxu0 0.0
      %1213 = vmatpush1.msra.mxu0 0.0
      %1214 = vmatprep.subr.mxu0 0.0
      %1215 = vmatpush1.msra.mxu0 0.0
      %1216 = vmatprep.subr.mxu0 0.0
      %1217 = vmatpush1.msra.mxu0 0.0
      %1218 = vmatprep.subr.mxu0 0.0
      %1219 = vmatpush1.msra.mxu0 0.0
      %1220 = vmatprep.subr.mxu0 0.0
      %1221 = vmatpush1.msra.mxu0 0.0
      %1222 = vmatprep.subr.mxu0 0.0
      %1223 = vmatpush1.msra.mxu0 0.0
      %1224 = vmatprep.subr.mxu0 0.0
      %1225 = vmatpush1.msra.mxu0 0.0
      %1226 = vmatprep.subr.mxu0 0.0
      %1227 = vmatpush1.msra.mxu0 0.0
      %1228 = vmatprep.mubr.f32.mxu0 0.0
      %1229 = vmatmul.mubr.f32.gmra.mrb[0].mxu0 %v1162
      %v1230 = vpop.f32.mrb[0].mxu0
      %v1231 = vadd.f32 %v1159, %v1230
      %v1232 = vpop.f32.mrb[0].mxu0
      %1233 = vdwg.mxu0
      %1234 = vmatprep.subr.mxu0 0.0
      %1235 = vmatpush1.msra.mxu0 %v211
      %1236 = vmatprep.subr.mxu0 0.0
      %1237 = vmatpush1.msra.mxu0 %v212
      %1238 = vmatprep.subr.mxu0 0.0
      %1239 = vmatpush1.msra.mxu0 %v213
      %1240 = vmatprep.subr.mxu0 0.0
      %1241 = vmatpush1.msra.mxu0 %v214
      %1242 = vmatprep.subr.mxu0 0.0
      %1243 = vmatpush1.msra.mxu0 0.0
      %1244 = vmatprep.subr.mxu0 0.0
      %1245 = vmatpush1.msra.mxu0 0.0
      %1246 = vmatprep.subr.mxu0 0.0
      %1247 = vmatpush1.msra.mxu0 0.0
      %1248 = vmatprep.subr.mxu0 0.0
      %1249 = vmatpush1.msra.mxu0 0.0
      %1250 = vmatprep.subr.mxu0 0.0
      %1251 = vmatpush1.msra.mxu0 0.0
      %1252 = vmatprep.subr.mxu0 0.0
      %1253 = vmatpush1.msra.mxu0 0.0
      %1254 = vmatprep.subr.mxu0 0.0
      %1255 = vmatpush1.msra.mxu0 0.0
      %1256 = vmatprep.subr.mxu0 0.0
      %1257 = vmatpush1.msra.mxu0 0.0
      %1258 = vmatprep.subr.mxu0 0.0
      %1259 = vmatpush1.msra.mxu0 0.0
      %1260 = vmatprep.subr.mxu0 0.0
      %1261 = vmatpush1.msra.mxu0 0.0
      %1262 = vmatprep.subr.mxu0 0.0
      %1263 = vmatpush1.msra.mxu0 0.0
      %1264 = vmatprep.subr.mxu0 0.0
      %1265 = vmatpush1.msra.mxu0 0.0
      %1266 = vmatprep.subr.mxu0 0.0
      %1267 = vmatpush1.msra.mxu0 0.0
      %1268 = vmatprep.subr.mxu0 0.0
      %1269 = vmatpush1.msra.mxu0 0.0
      %1270 = vmatprep.subr.mxu0 0.0
      %1271 = vmatpush1.msra.mxu0 0.0
      %1272 = vmatprep.subr.mxu0 0.0
      %1273 = vmatpush1.msra.mxu0 0.0
      %1274 = vmatprep.subr.mxu0 0.0
      %1275 = vmatpush1.msra.mxu0 0.0
      %1276 = vmatprep.subr.mxu0 0.0
      %1277 = vmatpush1.msra.mxu0 0.0
      %1278 = vmatprep.subr.mxu0 0.0
      %1279 = vmatpush1.msra.mxu0 0.0
      %1280 = vmatprep.subr.mxu0 0.0
      %1281 = vmatpush1.msra.mxu0 0.0
      %1282 = vmatprep.subr.mxu0 0.0
      %1283 = vmatpush1.msra.mxu0 0.0
      %1284 = vmatprep.subr.mxu0 0.0
      %1285 = vmatpush1.msra.mxu0 0.0
      %1286 = vmatprep.subr.mxu0 0.0
      %1287 = vmatpush1.msra.mxu0 0.0
      %1288 = vmatprep.subr.mxu0 0.0
      %1289 = vmatpush1.msra.mxu0 0.0
      %1290 = vmatprep.subr.mxu0 0.0
      %1291 = vmatpush1.msra.mxu0 0.0
      %1292 = vmatprep.subr.mxu0 0.0
      %1293 = vmatpush1.msra.mxu0 0.0
      %1294 = vmatprep.subr.mxu0 0.0
      %1295 = vmatpush1.msra.mxu0 0.0
      %1296 = vmatprep.subr.mxu0 0.0
      %1297 = vmatpush1.msra.mxu0 0.0
      %1298 = vmatprep.mubr.f32.mxu0 0.0
      %1299 = vmatmul.mubr.f32.gmra.mrb[0].mxu0 %v738
      %v1300 = vpop.f32.mrb[0].mxu0
      %v1301 = vadd.f32 0.0, %v1300
      %v1302 = vpop.f32.mrb[0].mxu0
      %1303 = vdwg.mxu0
      %v1304 = vadd.f32 %v1231, %v1301
      %v1305 = vxor.u32 %v1304, 2147483648
      %v1306 = vmul.f32 %v1305, 1.442695
      %v1307 = vpow.pop %v1306
      %v1308 = vadd.f32 %v1307, 1.0
      %v1309 = vrcp.pop %v1308
      %v1310 = vmul.f32 1.0, %v1309
      %v1312 = vlaneseq
      %v1313 = vshrl.u32 %v1312, 7
      %v1314 = vsub.s32 0, %v1313
      %v1315 = vrot.slane %v216, %v1314
      %1316 = vrot.lane.b32.xlu0 %v1315, 64
      %v1317 = vpop.permute.xlu0 %1316
      %v1319 = vadd.f32 %v1301, %v1317
      %1321 = vrot.lane.b32.xlu0 %v1319, 64
      %v1322 = vpop.permute.xlu0 %1321
      %v1324 = vmul.f32 %v1310, %v1322
      %1326 = vrot.lane.b32.xlu0 %v1324, 64
      %v1327 = vpop.permute.xlu0 %1326
      %v1329 = vadd.f32 %v1231, %v1327
      %v1330 = vtanh.pop %v1329
      %v1331 = vsub.f32 1.0, %v1310
      %1333 = vrot.lane.b32.xlu0 %v1330, 96
      %v1334 = vpop.permute.xlu0 %1333
      %v1336 = vmul.f32 %v1331, %v1334
      %v1337 = vmul.f32 %v1310, %v734
      %v1338 = vadd.f32 %v1336, %v1337
      %v1340 = vlaneseq
      %v1341 = vshrl.u32 %v1340, 7
      %v1342 = vsub.s32 0, %v1341
      %v1343 = vrot.slane %v233, %v1342
      %1346 = vrot.lane.b32.xlu0 %v1338, 96
      %v1347 = vpop.permute.xlu0 %1346
      %v1348 = vsel %vm234, %v1347, 0
      %1350 = vmatprep.subr.mxu0 0.0
      %1351 = vmatpush1.msra.mxu0 %v229
      %1352 = vmatprep.subr.mxu0 0.0
      %1353 = vmatpush1.msra.mxu0 %v230
      %1354 = vmatprep.subr.mxu0 0.0
      %1355 = vmatpush1.msra.mxu0 %v231
      %1356 = vmatprep.subr.mxu0 0.0
      %1357 = vmatpush1.msra.mxu0 %v232
      %1358 = vmatprep.subr.mxu0 0.0
      %1359 = vmatpush1.msra.mxu0 0.0
      %1360 = vmatprep.subr.mxu0 0.0
      %1361 = vmatpush1.msra.mxu0 0.0
      %1362 = vmatprep.subr.mxu0 0.0
      %1363 = vmatpush1.msra.mxu0 0.0
      %1364 = vmatprep.subr.mxu0 0.0
      %1365 = vmatpush1.msra.mxu0 0.0
      %1366 = vmatprep.subr.mxu0 0.0
      %1367 = vmatpush1.msra.mxu0 0.0
      %1368 = vmatprep.subr.mxu0 0.0
      %1369 = vmatpush1.msra.mxu0 0.0
      %1370 = vmatprep.subr.mxu0 0.0
      %1371 = vmatpush1.msra.mxu0 0.0
      %1372 = vmatprep.subr.mxu0 0.0
      %1373 = vmatpush1.msra.mxu0 0.0
      %1374 = vmatprep.subr.mxu0 0.0
      %1375 = vmatpush1.msra.mxu0 0.0
      %1376 = vmatprep.subr.mxu0 0.0
      %1377 = vmatpush1.msra.mxu0 0.0
      %1378 = vmatprep.subr.mxu0 0.0
      %1379 = vmatpush1.msra.mxu0 0.0
      %1380 = vmatprep.subr.mxu0 0.0
      %1381 = vmatpush1.msra.mxu0 0.0
      %1382 = vmatprep.subr.mxu0 0.0
      %1383 = vmatpush1.msra.mxu0 0.0
      %1384 = vmatprep.subr.mxu0 0.0
      %1385 = vmatpush1.msra.mxu0 0.0
      %1386 = vmatprep.subr.mxu0 0.0
      %1387 = vmatpush1.msra.mxu0 0.0
      %1388 = vmatprep.subr.mxu0 0.0
      %1389 = vmatpush1.msra.mxu0 0.0
      %1390 = vmatprep.subr.mxu0 0.0
      %1391 = vmatpush1.msra.mxu0 0.0
      %1392 = vmatprep.subr.mxu0 0.0
      %1393 = vmatpush1.msra.mxu0 0.0
      %1394 = vmatprep.subr.mxu0 0.0
      %1395 = vmatpush1.msra.mxu0 0.0
      %1396 = vmatprep.subr.mxu0 0.0
      %1397 = vmatpush1.msra.mxu0 0.0
      %1398 = vmatprep.subr.mxu0 0.0
      %1399 = vmatpush1.msra.mxu0 0.0
      %1400 = vmatprep.subr.mxu0 0.0
      %1401 = vmatpush1.msra.mxu0 0.0
      %1402 = vmatprep.subr.mxu0 0.0
      %1403 = vmatpush1.msra.mxu0 0.0
      %1404 = vmatprep.subr.mxu0 0.0
      %1405 = vmatpush1.msra.mxu0 0.0
      %1406 = vmatprep.subr.mxu0 0.0
      %1407 = vmatpush1.msra.mxu0 0.0
      %1408 = vmatprep.subr.mxu0 0.0
      %1409 = vmatpush1.msra.mxu0 0.0
      %1410 = vmatprep.subr.mxu0 0.0
      %1411 = vmatpush1.msra.mxu0 0.0
      %1412 = vmatprep.subr.mxu0 0.0
      %1413 = vmatpush1.msra.mxu0 0.0
      %1414 = vmatprep.mubr.f32.mxu0 0.0
      %1415 = vmatmul.mubr.f32.gmra.mrb[0].mxu0 %v1348
      %v1416 = vpop.f32.mrb[0].mxu0
      %v1417 = vadd.f32 %v1343, %v1416
      %v1418 = vpop.f32.mrb[0].mxu0
      %1419 = vdwg.mxu0
      %v1420 = vtanh.pop %v1417
      %s1421 = scalar_lea.vmem [#allocation20], %s621
      %1422 = vst.msk [vmem:[%s1421] sm:$0xff] %vm234, %v1420
    $region118: #{tpu_custom_call.1} parent=1 // loop_footer
      %s619 = sadd.s32 1, %s615
    $region119: #{tpu_custom_call.1} parent=1 // loop_footer_branch
      %614 = sbr.rel target = $region115
    $region120: #{tpu_custom_call.1} parent=1 // loop_exit
      _
    // Predicated region
    $region121: #{tpu_custom_call.1} parent=1 // pred_check
      _
    $region122: #{tpu_custom_call.1} parent=1 // pred_check_branch
      %1425 = sbr.rel (0) target = $region124
    $region123: #{tpu_custom_call.1} parent=1 // pred_region
      %s1427 = ssub.s32 896, 896
      %1428 = vsyncadd [#allocation5], %s1427
      %s1429 = sshll.u32 [#allocation20], 4
      %s1430 = int_to_ptr.vmem [resolvable:$true] %s1429
      %1435 = dma.vmem_to_hbm [thread:$0]  %s1430, 896, %s18, [#allocation5], 128, 128, 8
    $region124: #{tpu_custom_call.1} parent=1 // pred_fallthru
      _
    // Predicated region
    $region125: #{tpu_custom_call.1} parent=1 // pred_check
      _
    $region126: #{tpu_custom_call.1} parent=1 // pred_check_branch
      %1437 = sbr.rel (0) target = $region128
    $region127: #{tpu_custom_call.1} parent=1 // pred_region
      %1438 = dma.done [#allocation5], 896
    $region128: #{tpu_custom_call.1} parent=1 // pred_fallthru
      _
    %1439 = vsyncpa [#allocation4], 1
    %1440 = vsyncpa [#allocation7], 1
    %1441 = vsyncpa [#allocation10], 1
    %1442 = vsyncpa [#allocation13], 1
    %1443 = vsyncpa [#allocation16], 1
    %1444 = vsyncpa [#allocation19], 1
    %1445 = vsyncpa [#allocation5], 1

</llo_original>
